<compile_context>
chip_gen: v7x
topology: tpu7x:2x2x1
jax: 0.10.0
libtpu: 0.0.40
codegen_flags: <defaults>
</compile_context>

<pallas_src>
import math

import numpy as np
import jax
import jax.numpy as jnp
from jax.experimental import pallas as pl
from jax.experimental.pallas import tpu as pltpu


# ----------------------------------------------------------------------------
# Host-side, one-time weight preprocessing (plain numpy glue)
# ----------------------------------------------------------------------------
def _banded_conv_weight(w_hwio, W):
    """Fold the 3 horizontal taps AND the column reflection padding of a
    reflection-padded 3x3 conv into ONE (3*W*Cin, W*Cout) matrix (the three
    kernel-row blocks are concatenated along K), so a whole conv is a single
    lane-dense MXU matmul against [x_rowprev | x_row | x_rownext]."""
    kh, kw, Cin, Cout = w_hwio.shape
    pad = kw // 2
    wn = np.asarray(w_hwio, np.float32)
    M = np.zeros((kh, W * Cin, W * Cout), np.float32)
    for wout in range(W):
        for dx in range(kw):
            win = wout + dx - pad
            if win < 0:                      # reflection padding (no edge repeat)
                win = -win
            elif win > W - 1:
                win = 2 * (W - 1) - win
            M[:, win * Cin:(win + 1) * Cin,
                 wout * Cout:(wout + 1) * Cout] += wn[:, dx]
    return M.reshape(kh * W * Cin, W * Cout)        # K-fused: rows [M0; M1; M2]


def _conv1d_band_matrix(w1d, C):
    """(C, C) band matrix implementing Conv1d(1,1,k,padding=k//2,bias=False)
    over the channel axis: out = v @ M."""
    w = np.asarray(w1d, np.float32)
    k = w.shape[0]
    pad = k // 2
    M = np.zeros((C, C), np.float32)
    for o in range(C):
        for j in range(k):
            i = o + j - pad
            if 0 <= i < C:
                M[i, o] = w[j]
    return M


def preprocess_params(p, *, C, H, W):
    """Pack all parameters into 3 arrays so the kernel has only 4 DMA streams."""
    WC = W * C

    # (3, 3*WC, WC) bf16: banded, K-fused weights for conv1 / conv2 / shared conv3
    mconv = np.stack([_banded_conv_weight(np.asarray(p["w1"], np.float32), W),
                      _banded_conv_weight(np.asarray(p["w2"], np.float32), W),
                      _banded_conv_weight(np.asarray(p["w3"], np.float32), W)], 0)

    # (C + 3, WC) f32:
    #   rows 0..C-1 : 0/1 gate expander (gate lane w*C+c <- gate_c[c])  [aligned tile]
    #   rows C..C+2 : lane-tiled conv biases b1 / b2 / b3
    expand = np.zeros((C, WC), np.float32)
    for w in range(W):
        for c in range(C):
            expand[c, w * C + c] = 1.0
    biases = np.stack([np.tile(np.asarray(p["b1"], np.float32), W),
                       np.tile(np.asarray(p["b2"], np.float32), W),
                       np.tile(np.asarray(p["b3"], np.float32), W)], 0)
    b_exp = np.concatenate([expand, biases], axis=0)

    # (pad8(WC + 2C + 2), C) f32: pooled-mean reducer, DTCA conv1d band matrix,
    # fc weight (transposed), fc bias, precomputed sigmoid(Mix.w) factor.
    red = expand.T / float(H * W)                                   # (WC, C)
    m1d = _conv1d_band_matrix(p["w1d"], C)                          # (C, C)
    wfc_t = np.asarray(p["wfc"], np.float32).T                      # (C, C)
    bfc = np.asarray(p["bfc"], np.float32).reshape(1, C)
    mixf = 1.0 / (1.0 + math.exp(-float(p["mixw"])))                # sigmoid(Mix.w)
    pack = np.concatenate([red, m1d, wfc_t, bfc,
                           np.full((1, C), mixf, np.float32)], axis=0)
    pack = np.pad(pack, ((0, (-pack.shape[0]) % 8), (0, 0)))

    return {"mconv": jnp.asarray(mconv, jnp.bfloat16),   # bf16 MXU operands
            "b_exp": jnp.asarray(b_exp, jnp.float32),
            "dtca":  jnp.asarray(pack, jnp.float32)}


# ----------------------------------------------------------------------------
# The single fused Pallas kernel
# ----------------------------------------------------------------------------
def fused_residual_block(x_packed, q, *, C, H, W, Nb):
    N = x_packed.shape[0]
    WC = W * C
    R = Nb * H                               # rows per grid step
    PACK = q["dtca"].shape[0]

    def kernel(x_ref, mconv_ref, bexp_ref, dtca_ref, o_ref):
        # lane-dense activations: Nb images stacked into (Nb*H, W*C=128) rows
        x = x_ref[...].reshape(R, WC)

        baux = bexp_ref[...]                           # (C+3, WC)
        expand = baux[0:C]                             # (C, WC) gate expander
        dt = dtca_ref[...]                             # (PACK, C)
        red = dt[0:WC]                                 # (WC, C) pooled-mean reducer
        m1d = dt[WC:WC + C]                            # DTCA conv1d band matrix
        wfc = dt[WC + C:WC + 2 * C]                    # DTCA fc weight^T
        bfc = dt[WC + 2 * C:WC + 2 * C + 1]            # DTCA fc bias (1, C)
        mixf = dt[WC + 2 * C + 1:WC + 2 * C + 2, 0:1]  # sigmoid(Mix.w), (1, 1)

        # per-image row-reflection masks, hoisted and shared by all 4 convs
        row = jax.lax.broadcasted_iota(jnp.int32, (R, WC), 0)
        is_first = (row % H) == 0
        is_last = (row % H) == (H - 1)

        def conv3x3(v, widx):
            # Shift the whole Nb*H stack by +-1 row, then fix the per-image
            # reflection rows with a select (shift filler rows are never used).
            up = jnp.concatenate([v[:1], v[:-1]], axis=0)     # row r <- v[r-1]
            dn = jnp.concatenate([v[1:], v[-1:]], axis=0)     # row r <- v[r+1]
            vprev = jnp.where(is_first, dn, up)               # reflect top row
            vnext = jnp.where(is_last, up, dn)                # reflect bottom row
            # ONE K=3*WC MXU matmul per conv: lane concat of the 3 row taps
            # (column reflection + horizontal taps are folded into the weights).
            vcat = jnp.concatenate([vprev, v, vnext], axis=1)  # (R, 3*WC)
            acc = jnp.dot(vcat.astype(jnp.bfloat16), mconv_ref[widx],
                          preferred_element_type=jnp.float32)
            return acc + baux[C + widx:C + widx + 1]           # f32 bias add

        lrelu = lambda v: jnp.where(v >= 0, v, 0.2 * v)        # LeakyReLU(0.2)

        # ---- ResidualBlock0 ----
        t = lrelu(conv3x3(x, 0))
        rb0 = conv3x3(t, 1) + x

        # ---- ResidualBlock1 (conv weights index 2 shared by both convs) ----
        t = lrelu(conv3x3(rb0, 2))

        # ---- DTCA (per-image pooled (Nb, C) path; tiny, stays in vregs) ----
        t3 = t.reshape(Nb, H, WC)
        rowsum = jnp.sum(t3, axis=1)                                       # (Nb, WC)
        pooled = jnp.dot(rowsum, red, preferred_element_type=jnp.float32)  # spatial mean
        x1 = jnp.dot(pooled, m1d, preferred_element_type=jnp.float32)      # conv1d
        x2 = jnp.dot(pooled, wfc, preferred_element_type=jnp.float32) + bfc  # 1x1 fc
        s1 = jnp.sum(x1, axis=1, keepdims=True)
        s2 = jnp.sum(x2, axis=1, keepdims=True)
        out1 = jax.nn.sigmoid(s1 * x2)     # sum_dim1(matmul(x1,x2))    == sum(x1)*x2
        out2 = jax.nn.sigmoid(s2 * x1)     # sum_dim1(matmul(x2^T,x1^T)) == sum(x2)*x1
        mixed = out1 * mixf + out2 * (1.0 - mixf)
        gate_c = jax.nn.sigmoid(jnp.dot(mixed, m1d,
                                        preferred_element_type=jnp.float32))  # (Nb, C)
        gate = jnp.dot(gate_c, expand, preferred_element_type=jnp.float32)    # (Nb, WC)
        gated = (t3 * gate[:, None, :]).reshape(R, WC)

        out = conv3x3(gated, 2) + rb0
        o_ref[...] = out.reshape(Nb, H, WC)

    feat = lambda n: (n, 0, 0)
    return pl.pallas_call(
        kernel,
        out_shape=jax.ShapeDtypeStruct((N, H, WC), jnp.float32),
        grid=(N // Nb,),
        in_specs=[
            pl.BlockSpec((Nb, H, WC), feat),                   # x (lane-packed images)
            pl.BlockSpec((3, 3 * WC, WC), lambda n: (0, 0, 0)),  # banded conv weights
            pl.BlockSpec((C + 3, WC), lambda n: (0, 0)),         # gate expander + biases
            pl.BlockSpec((PACK, C), lambda n: (0, 0)),           # packed DTCA params
        ],
        out_specs=pl.BlockSpec((Nb, H, WC), feat),
        compiler_params=pltpu.CompilerParams(
            dimension_semantics=("parallel",),     # >=2 steps -> both TCs on v7x
            vmem_limit_bytes=32 * 1024 * 1024,
        ),
    )(x_packed, q["mconv"], q["b_exp"], q["dtca"])


def _pick_images_per_step(n):
    # Batch rows into each MXU matmul while keeping >=2 grid steps when possible
    # (v7x has 2 TensorCores; a 1-step grid would serialize onto one of them).
    for nb in (4, 2):
        if n % nb == 0 and n // nb >= 2:
            return nb
    return 1


def residual_block_forward(x_nchw, q, *, C, H, W, images_per_step=None):
    N = x_nchw.shape[0]
    Nb = images_per_step if images_per_step is not None else _pick_images_per_step(N)
    assert N % Nb == 0, "batch must be divisible by images_per_step"
    # NCHW -> NHWC -> lane-dense (N, H, W*C); both reshapes/transposes are edge glue.
    x = jnp.transpose(x_nchw, (0, 2, 3, 1)).reshape(N, H, W * C).astype(jnp.float32)
    out = fused_residual_block(x, q, C=C, H=H, W=W, Nb=Nb)
    return jnp.transpose(out.reshape(N, H, W, C), (0, 3, 1, 2))


# ----------------------------------------------------------------------------
# Pure-JAX reference (independent math path) for validation
# ----------------------------------------------------------------------------
def _ref_conv3x3(x, w, b):
    xp = jnp.pad(x, ((0, 0), (1, 1), (1, 1), (0, 0)), mode="reflect")
    y = jax.lax.conv_general_dilated(
        xp, w, window_strides=(1, 1), padding="VALID",
        dimension_numbers=("NHWC", "HWIO", "NHWC"))
    return y + b[None, None, None, :]


def _ref_conv1d(v, w1d):
    k = w1d.shape[0]
    pad = k // 2
    vp = jnp.pad(v, ((0, 0), (pad, pad)))
    C = v.shape[1]
    cols = [sum(w1d[j] * vp[:, c + j] for j in range(k)) for c in range(C)]
    return jnp.stack(cols, axis=1)


def _ref_dtca(y, w1d, wfc, bfc, mixw):
    x = jnp.mean(y, axis=(1, 2))                                   # (N,C)
    x1 = _ref_conv1d(x, w1d)                                       # (N,C) column vec
    x2 = x @ wfc.T + bfc                                           # (N,C) row vec
    m1 = x1[:, :, None] * x2[:, None, :]
    out1 = jax.nn.sigmoid(jnp.sum(m1, axis=1))
    m2 = x2[:, :, None] * x1[:, None, :]
    out2 = jax.nn.sigmoid(jnp.sum(m2, axis=1))
    mf = jax.nn.sigmoid(mixw)
    out = out1 * mf + out2 * (1.0 - mf)
    gate = jax.nn.sigmoid(_ref_conv1d(out, w1d))
    return y * gate[:, None, None, :]


def _ref_forward_nhwc(x, p):
    lrelu = lambda v: jnp.where(v >= 0, v, 0.2 * v)
    out = lrelu(_ref_conv3x3(x, p["w1"], p["b1"]))
    rb0 = _ref_conv3x3(out, p["w2"], p["b2"]) + x
    out = lrelu(_ref_conv3x3(rb0, p["w3"], p["b3"]))
    out = _ref_dtca(out, p["w1d"], p["wfc"], p["bfc"], p["mixw"])
    out = _ref_conv3x3(out, p["w3"], p["b3"]) + rb0
    return out


# ----------------------------------------------------------------------------
if __name__ == "__main__":
    N, C, H, W = 4, 8, 16, 16          # W*C = 128 -> exactly fills the lane axis

    # DTCA conv1d kernel size (as in the PyTorch __init__): C=8 -> k=3
    t = int(abs((math.log(C, 2) + 1) / 2))
    k1d = t if t % 2 else t + 1

    key = jax.random.PRNGKey(0)
    ks = jax.random.split(key, 12)

    def rnd(kk, shape, scale=0.1):
        return (scale * jax.random.normal(kk, shape)).astype(jnp.float32)

    params = {
        # ResidualBlock0
        "w1": rnd(ks[1], (3, 3, C, C)), "b1": rnd(ks[2], (C,)),
        "w2": rnd(ks[3], (3, 3, C, C)), "b2": rnd(ks[4], (C,)),
        # ResidualBlock1 shared conv
        "w3": rnd(ks[5], (3, 3, C, C)), "b3": rnd(ks[6], (C,)),
        # DTCA
        "w1d": rnd(ks[7], (k1d,), scale=0.3),
        "wfc": rnd(ks[8], (C, C)),        # (Cout, Cin) like Conv2d 1x1
        "bfc": rnd(ks[9], (C,)),
        "mixw": jnp.float32(-0.8),        # Mix parameter
    }
    q = preprocess_params(params, C=C, H=H, W=W)

    x_nchw = jax.random.normal(ks[0], (N, C, H, W), dtype=jnp.float32)

    out = residual_block_forward(x_nchw, q, C=C, H=H, W=W)
    out = jax.block_until_ready(out)

    # correctness check against a pure-JAX f32 reference
    ref = jnp.transpose(
        _ref_forward_nhwc(jnp.transpose(x_nchw, (0, 2, 3, 1)), params),
        (0, 3, 1, 2))
    max_err = float(jnp.max(jnp.abs(out - ref)))
    assert out.shape == (N, C, H, W)
    # bf16 MXU operands (per perf review) -> tolerance relaxed from 1e-4;
    # typical max abs err vs the f32 reference is ~1e-2 at these shapes.
    assert max_err < 5e-2, f"mismatch vs reference, max abs err = {max_err}"

    print("KERNEL_OK")
</pallas_src>

<mosaic_0001>
module attributes {stable_mosaic.version = 11 : i64} {
  func.func @kernel(%arg0: i32, %arg1: memref<2x16x128xf32, #tpu.memory_space<vmem>>, %arg2: memref<3x384x128xbf16, #tpu.memory_space<vmem>>, %arg3: memref<11x128xf32, #tpu.memory_space<vmem>>, %arg4: memref<152x8xf32, #tpu.memory_space<vmem>>, %arg5: memref<2x16x128xf32, #tpu.memory_space<vmem>>) attributes {dimension_semantics = [#tpu.dimension_semantics<parallel>], iteration_bounds = array<i64: 2>, scalar_prefetch = 0 : i64, scratch_operands = 0 : i64, tpu.core_type = #tpu.core_type<tc>, window_params = [{transform_indices = @transform_0, window_bounds = array<i64: 2, 16, 128>}, {pipeline_mode = #tpu.pipeline_mode<synchronous>, transform_indices = @transform_1, window_bounds = array<i64: 3, 384, 128>}, {pipeline_mode = #tpu.pipeline_mode<synchronous>, transform_indices = @transform_2, window_bounds = array<i64: 11, 128>}, {pipeline_mode = #tpu.pipeline_mode<synchronous>, transform_indices = @transform_3, window_bounds = array<i64: 152, 8>}, {transform_indices = @transform_4, window_bounds = array<i64: 2, 16, 128>}]} {
    %c0 = arith.constant 0 : index
    %c0_0 = arith.constant 0 : index
    %c0_1 = arith.constant 0 : index
    %0 = vector.load %arg1[%c0, %c0_0, %c0_1] : memref<2x16x128xf32, #tpu.memory_space<vmem>>, vector<2x16x128xf32>
    %1 = vector.shape_cast %0 : vector<2x16x128xf32> to vector<32x128xf32>
    %c0_2 = arith.constant 0 : index
    %c0_3 = arith.constant 0 : index
    %2 = vector.load %arg3[%c0_2, %c0_3] : memref<11x128xf32, #tpu.memory_space<vmem>>, vector<11x128xf32>
    %3 = vector.extract_strided_slice %2 {offsets = [0, 0], sizes = [8, 128], strides = [1, 1]} : vector<11x128xf32> to vector<8x128xf32>
    %c0_4 = arith.constant 0 : index
    %c0_5 = arith.constant 0 : index
    %4 = vector.load %arg4[%c0_4, %c0_5] : memref<152x8xf32, #tpu.memory_space<vmem>>, vector<152x8xf32>
    %5 = vector.extract_strided_slice %4 {offsets = [0, 0], sizes = [128, 8], strides = [1, 1]} : vector<152x8xf32> to vector<128x8xf32>
    %6 = vector.extract_strided_slice %4 {offsets = [128, 0], sizes = [8, 8], strides = [1, 1]} : vector<152x8xf32> to vector<8x8xf32>
    %7 = vector.extract_strided_slice %4 {offsets = [136, 0], sizes = [8, 8], strides = [1, 1]} : vector<152x8xf32> to vector<8x8xf32>
    %8 = vector.extract_strided_slice %4 {offsets = [144, 0], sizes = [1, 8], strides = [1, 1]} : vector<152x8xf32> to vector<1x8xf32>
    %9 = vector.extract_strided_slice %4 {offsets = [145, 0], sizes = [1, 1], strides = [1, 1]} : vector<152x8xf32> to vector<1x1xf32>
    %10 = tpu.iota {dimensions = array<i32: 0>} : vector<32x128xi32>
    %c16_i32 = arith.constant 16 : i32
    %c0_i32 = arith.constant 0 : i32
    %11 = arith.cmpi eq, %c16_i32, %c0_i32 : i32
    %c1_i32 = arith.constant 1 : i32
    %12 = arith.select %11, %c1_i32, %c16_i32 : i32
    %13 = vector.broadcast %12 : i32 to vector<32x128xi32>
    %14 = arith.remsi %10, %13 : vector<32x128xi32>
    %c0_i32_6 = arith.constant 0 : i32
    %15 = vector.broadcast %c0_i32_6 : i32 to vector<32x128xi32>
    %16 = arith.cmpi ne, %14, %15 : vector<32x128xi32>
    %c0_i32_7 = arith.constant 0 : i32
    %17 = vector.broadcast %c0_i32_7 : i32 to vector<32x128xi32>
    %18 = arith.cmpi slt, %14, %17 : vector<32x128xi32>
    %c0_i32_8 = arith.constant 0 : i32
    %19 = arith.cmpi slt, %12, %c0_i32_8 : i32
    %20 = vector.broadcast %19 : i1 to vector<32x128xi1>
    %21 = vector.broadcast %20 : vector<32x128xi1> to vector<32x128xi1>
    %22 = arith.xori %18, %21 : vector<32x128xi1>
    %23 = arith.andi %22, %16 : vector<32x128xi1>
    %24 = vector.broadcast %12 : i32 to vector<32x128xi32>
    %25 = arith.addi %14, %24 : vector<32x128xi32>
    %26 = arith.select %23, %25, %14 : vector<32x128xi1>, vector<32x128xi32>
    %c0_i32_9 = arith.constant 0 : i32
    %27 = vector.broadcast %c0_i32_9 : i32 to vector<32x128xi32>
    %28 = arith.cmpi eq, %26, %27 : vector<32x128xi32>
    %c16_i32_10 = arith.constant 16 : i32
    %c0_i32_11 = arith.constant 0 : i32
    %29 = arith.cmpi eq, %c16_i32_10, %c0_i32_11 : i32
    %c1_i32_12 = arith.constant 1 : i32
    %30 = arith.select %29, %c1_i32_12, %c16_i32_10 : i32
    %31 = vector.broadcast %30 : i32 to vector<32x128xi32>
    %32 = arith.remsi %10, %31 : vector<32x128xi32>
    %c0_i32_13 = arith.constant 0 : i32
    %33 = vector.broadcast %c0_i32_13 : i32 to vector<32x128xi32>
    %34 = arith.cmpi ne, %32, %33 : vector<32x128xi32>
    %c0_i32_14 = arith.constant 0 : i32
    %35 = vector.broadcast %c0_i32_14 : i32 to vector<32x128xi32>
    %36 = arith.cmpi slt, %32, %35 : vector<32x128xi32>
    %c0_i32_15 = arith.constant 0 : i32
    %37 = arith.cmpi slt, %30, %c0_i32_15 : i32
    %38 = vector.broadcast %37 : i1 to vector<32x128xi1>
    %39 = vector.broadcast %38 : vector<32x128xi1> to vector<32x128xi1>
    %40 = arith.xori %36, %39 : vector<32x128xi1>
    %41 = arith.andi %40, %34 : vector<32x128xi1>
    %42 = vector.broadcast %30 : i32 to vector<32x128xi32>
    %43 = arith.addi %32, %42 : vector<32x128xi32>
    %44 = arith.select %41, %43, %32 : vector<32x128xi1>, vector<32x128xi32>
    %c15_i32 = arith.constant 15 : i32
    %45 = vector.broadcast %c15_i32 : i32 to vector<32x128xi32>
    %46 = arith.cmpi eq, %44, %45 : vector<32x128xi32>
    %47 = vector.extract_strided_slice %1 {offsets = [0, 0], sizes = [1, 128], strides = [1, 1]} : vector<32x128xf32> to vector<1x128xf32>
    %48 = vector.extract_strided_slice %1 {offsets = [0, 0], sizes = [31, 128], strides = [1, 1]} : vector<32x128xf32> to vector<31x128xf32>
    %49 = tpu.concatenate %47, %48 in 0 : vector<1x128xf32>, vector<31x128xf32> -> vector<32x128xf32>
    %50 = vector.extract_strided_slice %1 {offsets = [1, 0], sizes = [31, 128], strides = [1, 1]} : vector<32x128xf32> to vector<31x128xf32>
    %51 = vector.extract_strided_slice %1 {offsets = [31, 0], sizes = [1, 128], strides = [1, 1]} : vector<32x128xf32> to vector<1x128xf32>
    %52 = tpu.concatenate %50, %51 in 0 : vector<31x128xf32>, vector<1x128xf32> -> vector<32x128xf32>
    %53 = arith.select %28, %52, %49 : vector<32x128xi1>, vector<32x128xf32>
    %54 = arith.select %46, %49, %52 : vector<32x128xi1>, vector<32x128xf32>
    %55 = tpu.concatenate %53, %1, %54 in 1 : vector<32x128xf32>, vector<32x128xf32>, vector<32x128xf32> -> vector<32x384xf32>
    %56 = arith.truncf %55 : vector<32x384xf32> to vector<32x384xbf16>
    %c0_16 = arith.constant 0 : index
    %c0_17 = arith.constant 0 : index
    %c0_18 = arith.constant 0 : index
    %57 = vector.load %arg2[%c0_16, %c0_17, %c0_18] : memref<3x384x128xbf16, #tpu.memory_space<vmem>>, vector<1x384x128xbf16>
    %58 = vector.shape_cast %57 : vector<1x384x128xbf16> to vector<384x128xbf16>
    %cst = arith.constant dense<0.000000e+00> : vector<32x128xf32>
    %59 = tpu.matmul %56, %58, %cst {dimension_numbers = #tpu.dot_dimension_numbers<[1], [0], [0], [1], [0, 0, 1, 1], [], []>} : vector<32x384xbf16>, vector<384x128xbf16>, vector<32x128xf32> -> vector<32x128xf32>
    %60 = vector.extract_strided_slice %2 {offsets = [8, 0], sizes = [1, 128], strides = [1, 1]} : vector<11x128xf32> to vector<1x128xf32>
    %61 = vector.broadcast %60 : vector<1x128xf32> to vector<32x128xf32>
    %62 = arith.addf %59, %61 : vector<32x128xf32>
    %cst_19 = arith.constant 0.000000e+00 : f32
    %63 = vector.broadcast %cst_19 : f32 to vector<32x128xf32>
    %64 = arith.cmpf oge, %62, %63 : vector<32x128xf32>
    %cst_20 = arith.constant 2.000000e-01 : f32
    %65 = vector.broadcast %cst_20 : f32 to vector<32x128xf32>
    %66 = arith.mulf %65, %62 : vector<32x128xf32>
    %67 = arith.select %64, %62, %66 : vector<32x128xi1>, vector<32x128xf32>
    %68 = vector.extract_strided_slice %67 {offsets = [0, 0], sizes = [1, 128], strides = [1, 1]} : vector<32x128xf32> to vector<1x128xf32>
    %69 = vector.extract_strided_slice %67 {offsets = [0, 0], sizes = [31, 128], strides = [1, 1]} : vector<32x128xf32> to vector<31x128xf32>
    %70 = tpu.concatenate %68, %69 in 0 : vector<1x128xf32>, vector<31x128xf32> -> vector<32x128xf32>
    %71 = vector.extract_strided_slice %67 {offsets = [1, 0], sizes = [31, 128], strides = [1, 1]} : vector<32x128xf32> to vector<31x128xf32>
    %72 = vector.extract_strided_slice %67 {offsets = [31, 0], sizes = [1, 128], strides = [1, 1]} : vector<32x128xf32> to vector<1x128xf32>
    %73 = tpu.concatenate %71, %72 in 0 : vector<31x128xf32>, vector<1x128xf32> -> vector<32x128xf32>
    %74 = arith.select %28, %73, %70 : vector<32x128xi1>, vector<32x128xf32>
    %75 = arith.select %46, %70, %73 : vector<32x128xi1>, vector<32x128xf32>
    %76 = tpu.concatenate %74, %67, %75 in 1 : vector<32x128xf32>, vector<32x128xf32>, vector<32x128xf32> -> vector<32x384xf32>
    %77 = arith.truncf %76 : vector<32x384xf32> to vector<32x384xbf16>
    %c1 = arith.constant 1 : index
    %c0_21 = arith.constant 0 : index
    %c0_22 = arith.constant 0 : index
    %78 = vector.load %arg2[%c1, %c0_21, %c0_22] : memref<3x384x128xbf16, #tpu.memory_space<vmem>>, vector<1x384x128xbf16>
    %79 = vector.shape_cast %78 : vector<1x384x128xbf16> to vector<384x128xbf16>
    %cst_23 = arith.constant dense<0.000000e+00> : vector<32x128xf32>
    %80 = tpu.matmul %77, %79, %cst_23 {dimension_numbers = #tpu.dot_dimension_numbers<[1], [0], [0], [1], [0, 0, 1, 1], [], []>} : vector<32x384xbf16>, vector<384x128xbf16>, vector<32x128xf32> -> vector<32x128xf32>
    %81 = vector.extract_strided_slice %2 {offsets = [9, 0], sizes = [1, 128], strides = [1, 1]} : vector<11x128xf32> to vector<1x128xf32>
    %82 = vector.broadcast %81 : vector<1x128xf32> to vector<32x128xf32>
    %83 = arith.addf %80, %82 : vector<32x128xf32>
    %84 = arith.addf %83, %1 : vector<32x128xf32>
    %85 = vector.extract_strided_slice %84 {offsets = [0, 0], sizes = [1, 128], strides = [1, 1]} : vector<32x128xf32> to vector<1x128xf32>
    %86 = vector.extract_strided_slice %84 {offsets = [0, 0], sizes = [31, 128], strides = [1, 1]} : vector<32x128xf32> to vector<31x128xf32>
    %87 = tpu.concatenate %85, %86 in 0 : vector<1x128xf32>, vector<31x128xf32> -> vector<32x128xf32>
    %88 = vector.extract_strided_slice %84 {offsets = [1, 0], sizes = [31, 128], strides = [1, 1]} : vector<32x128xf32> to vector<31x128xf32>
    %89 = vector.extract_strided_slice %84 {offsets = [31, 0], sizes = [1, 128], strides = [1, 1]} : vector<32x128xf32> to vector<1x128xf32>
    %90 = tpu.concatenate %88, %89 in 0 : vector<31x128xf32>, vector<1x128xf32> -> vector<32x128xf32>
    %91 = arith.select %28, %90, %87 : vector<32x128xi1>, vector<32x128xf32>
    %92 = arith.select %46, %87, %90 : vector<32x128xi1>, vector<32x128xf32>
    %93 = tpu.concatenate %91, %84, %92 in 1 : vector<32x128xf32>, vector<32x128xf32>, vector<32x128xf32> -> vector<32x384xf32>
    %94 = arith.truncf %93 : vector<32x384xf32> to vector<32x384xbf16>
    %c2 = arith.constant 2 : index
    %c0_24 = arith.constant 0 : index
    %c0_25 = arith.constant 0 : index
    %95 = vector.load %arg2[%c2, %c0_24, %c0_25] : memref<3x384x128xbf16, #tpu.memory_space<vmem>>, vector<1x384x128xbf16>
    %96 = vector.shape_cast %95 : vector<1x384x128xbf16> to vector<384x128xbf16>
    %cst_26 = arith.constant dense<0.000000e+00> : vector<32x128xf32>
    %97 = tpu.matmul %94, %96, %cst_26 {dimension_numbers = #tpu.dot_dimension_numbers<[1], [0], [0], [1], [0, 0, 1, 1], [], []>} : vector<32x384xbf16>, vector<384x128xbf16>, vector<32x128xf32> -> vector<32x128xf32>
    %98 = vector.extract_strided_slice %2 {offsets = [10, 0], sizes = [1, 128], strides = [1, 1]} : vector<11x128xf32> to vector<1x128xf32>
    %99 = vector.broadcast %98 : vector<1x128xf32> to vector<32x128xf32>
    %100 = arith.addf %97, %99 : vector<32x128xf32>
    %cst_27 = arith.constant 0.000000e+00 : f32
    %101 = vector.broadcast %cst_27 : f32 to vector<32x128xf32>
    %102 = arith.cmpf oge, %100, %101 : vector<32x128xf32>
    %cst_28 = arith.constant 2.000000e-01 : f32
    %103 = vector.broadcast %cst_28 : f32 to vector<32x128xf32>
    %104 = arith.mulf %103, %100 : vector<32x128xf32>
    %105 = arith.select %102, %100, %104 : vector<32x128xi1>, vector<32x128xf32>
    %106 = vector.shape_cast %105 : vector<32x128xf32> to vector<2x16x128xf32>
    %cst_29 = arith.constant dense<0.000000e+00> : vector<2x128xf32>
    %107 = vector.multi_reduction <add>, %106, %cst_29 [1] : vector<2x16x128xf32> to vector<2x128xf32>
    %cst_30 = arith.constant dense<0.000000e+00> : vector<2x8xf32>
    %108 = tpu.matmul %107, %5, %cst_30 {dimension_numbers = #tpu.dot_dimension_numbers<[1], [0], [0], [1], [0, 0, 1, 1], [], []>} : vector<2x128xf32>, vector<128x8xf32>, vector<2x8xf32> -> vector<2x8xf32>
    %cst_31 = arith.constant dense<0.000000e+00> : vector<2x8xf32>
    %109 = tpu.matmul %108, %6, %cst_31 {dimension_numbers = #tpu.dot_dimension_numbers<[1], [0], [0], [1], [0, 0, 1, 1], [], []>} : vector<2x8xf32>, vector<8x8xf32>, vector<2x8xf32> -> vector<2x8xf32>
    %cst_32 = arith.constant dense<0.000000e+00> : vector<2x8xf32>
    %110 = tpu.matmul %108, %7, %cst_32 {dimension_numbers = #tpu.dot_dimension_numbers<[1], [0], [0], [1], [0, 0, 1, 1], [], []>} : vector<2x8xf32>, vector<8x8xf32>, vector<2x8xf32> -> vector<2x8xf32>
    %111 = vector.broadcast %8 : vector<1x8xf32> to vector<2x8xf32>
    %112 = arith.addf %110, %111 : vector<2x8xf32>
    %cst_33 = arith.constant dense<0.000000e+00> : vector<2xf32>
    %113 = vector.multi_reduction <add>, %109, %cst_33 [1] : vector<2x8xf32> to vector<2xf32>
    %114 = vector.shape_cast %113 : vector<2xf32> to vector<2x1xf32>
    %cst_34 = arith.constant dense<0.000000e+00> : vector<2xf32>
    %115 = vector.multi_reduction <add>, %112, %cst_34 [1] : vector<2x8xf32> to vector<2xf32>
    %116 = vector.shape_cast %115 : vector<2xf32> to vector<2x1xf32>
    %117 = vector.broadcast %114 : vector<2x1xf32> to vector<2x8xf32>
    %118 = arith.mulf %117, %112 : vector<2x8xf32>
    %119 = arith.negf %118 : vector<2x8xf32>
    %120 = math.exp %119 : vector<2x8xf32>
    %cst_35 = arith.constant 1.000000e+00 : f32
    %121 = vector.broadcast %cst_35 : f32 to vector<2x8xf32>
    %122 = arith.addf %121, %120 : vector<2x8xf32>
    %123 = arith.divf %121, %122 : vector<2x8xf32>
    %124 = vector.broadcast %116 : vector<2x1xf32> to vector<2x8xf32>
    %125 = arith.mulf %124, %109 : vector<2x8xf32>
    %126 = arith.negf %125 : vector<2x8xf32>
    %127 = math.exp %126 : vector<2x8xf32>
    %cst_36 = arith.constant 1.000000e+00 : f32
    %128 = vector.broadcast %cst_36 : f32 to vector<2x8xf32>
    %129 = arith.addf %128, %127 : vector<2x8xf32>
    %130 = arith.divf %128, %129 : vector<2x8xf32>
    %131 = vector.broadcast %9 : vector<1x1xf32> to vector<2x8xf32>
    %132 = arith.mulf %123, %131 : vector<2x8xf32>
    %cst_37 = arith.constant 1.000000e+00 : f32
    %133 = vector.broadcast %cst_37 : f32 to vector<1x1xf32>
    %134 = arith.subf %133, %9 : vector<1x1xf32>
    %135 = vector.broadcast %134 : vector<1x1xf32> to vector<2x8xf32>
    %136 = arith.mulf %130, %135 : vector<2x8xf32>
    %137 = arith.addf %132, %136 : vector<2x8xf32>
    %cst_38 = arith.constant dense<0.000000e+00> : vector<2x8xf32>
    %138 = tpu.matmul %137, %6, %cst_38 {dimension_numbers = #tpu.dot_dimension_numbers<[1], [0], [0], [1], [0, 0, 1, 1], [], []>} : vector<2x8xf32>, vector<8x8xf32>, vector<2x8xf32> -> vector<2x8xf32>
    %139 = arith.negf %138 : vector<2x8xf32>
    %140 = math.exp %139 : vector<2x8xf32>
    %cst_39 = arith.constant 1.000000e+00 : f32
    %141 = vector.broadcast %cst_39 : f32 to vector<2x8xf32>
    %142 = arith.addf %141, %140 : vector<2x8xf32>
    %143 = arith.divf %141, %142 : vector<2x8xf32>
    %cst_40 = arith.constant dense<0.000000e+00> : vector<2x128xf32>
    %144 = tpu.matmul %143, %3, %cst_40 {dimension_numbers = #tpu.dot_dimension_numbers<[1], [0], [0], [1], [0, 0, 1, 1], [], []>} : vector<2x8xf32>, vector<8x128xf32>, vector<2x128xf32> -> vector<2x128xf32>
    %145 = vector.shape_cast %144 : vector<2x128xf32> to vector<2x1x128xf32>
    %146 = vector.broadcast %145 : vector<2x1x128xf32> to vector<2x16x128xf32>
    %147 = arith.mulf %106, %146 : vector<2x16x128xf32>
    %148 = vector.shape_cast %147 : vector<2x16x128xf32> to vector<32x128xf32>
    %149 = vector.extract_strided_slice %148 {offsets = [0, 0], sizes = [1, 128], strides = [1, 1]} : vector<32x128xf32> to vector<1x128xf32>
    %150 = vector.extract_strided_slice %148 {offsets = [0, 0], sizes = [31, 128], strides = [1, 1]} : vector<32x128xf32> to vector<31x128xf32>
    %151 = tpu.concatenate %149, %150 in 0 : vector<1x128xf32>, vector<31x128xf32> -> vector<32x128xf32>
    %152 = vector.extract_strided_slice %148 {offsets = [1, 0], sizes = [31, 128], strides = [1, 1]} : vector<32x128xf32> to vector<31x128xf32>
    %153 = vector.extract_strided_slice %148 {offsets = [31, 0], sizes = [1, 128], strides = [1, 1]} : vector<32x128xf32> to vector<1x128xf32>
    %154 = tpu.concatenate %152, %153 in 0 : vector<31x128xf32>, vector<1x128xf32> -> vector<32x128xf32>
    %155 = arith.select %28, %154, %151 : vector<32x128xi1>, vector<32x128xf32>
    %156 = arith.select %46, %151, %154 : vector<32x128xi1>, vector<32x128xf32>
    %157 = tpu.concatenate %155, %148, %156 in 1 : vector<32x128xf32>, vector<32x128xf32>, vector<32x128xf32> -> vector<32x384xf32>
    %158 = arith.truncf %157 : vector<32x384xf32> to vector<32x384xbf16>
    %c2_41 = arith.constant 2 : index
    %c0_42 = arith.constant 0 : index
    %c0_43 = arith.constant 0 : index
    %159 = vector.load %arg2[%c2_41, %c0_42, %c0_43] : memref<3x384x128xbf16, #tpu.memory_space<vmem>>, vector<1x384x128xbf16>
    %160 = vector.shape_cast %159 : vector<1x384x128xbf16> to vector<384x128xbf16>
    %cst_44 = arith.constant dense<0.000000e+00> : vector<32x128xf32>
    %161 = tpu.matmul %158, %160, %cst_44 {dimension_numbers = #tpu.dot_dimension_numbers<[1], [0], [0], [1], [0, 0, 1, 1], [], []>} : vector<32x384xbf16>, vector<384x128xbf16>, vector<32x128xf32> -> vector<32x128xf32>
    %162 = vector.extract_strided_slice %2 {offsets = [10, 0], sizes = [1, 128], strides = [1, 1]} : vector<11x128xf32> to vector<1x128xf32>
    %163 = vector.broadcast %162 : vector<1x128xf32> to vector<32x128xf32>
    %164 = arith.addf %161, %163 : vector<32x128xf32>
    %165 = arith.addf %164, %84 : vector<32x128xf32>
    %166 = vector.shape_cast %165 : vector<32x128xf32> to vector<2x16x128xf32>
    %c0_45 = arith.constant 0 : index
    %c0_46 = arith.constant 0 : index
    %c0_47 = arith.constant 0 : index
    %167 = vector.load %arg5[%c0_45, %c0_46, %c0_47] : memref<2x16x128xf32, #tpu.memory_space<vmem>>, vector<2x16x128xf32>
    tpu.vector_store %arg5[%c0_45, %c0_46, %c0_47], %166 {strides = array<i32>} : memref<2x16x128xf32, #tpu.memory_space<vmem>>, vector<2x16x128xf32>,
    return
  }
  func.func @transform_0(%arg0: i32) -> (i32, i32, i32) {
    %c0_i32 = arith.constant 0 : i32
    %c0_i32_0 = arith.constant 0 : i32
    %c0_i32_1 = arith.constant 0 : i32
    return %arg0, %c0_i32, %c0_i32_0 : i32, i32, i32
  }
  func.func @transform_1(%arg0: i32) -> (i32, i32, i32) {
    %c0_i32 = arith.constant 0 : i32
    %c0_i32_0 = arith.constant 0 : i32
    %c0_i32_1 = arith.constant 0 : i32
    %c0_i32_2 = arith.constant 0 : i32
    return %c0_i32, %c0_i32_0, %c0_i32_1 : i32, i32, i32
  }
  func.func @transform_2(%arg0: i32) -> (i32, i32) {
    %c0_i32 = arith.constant 0 : i32
    %c0_i32_0 = arith.constant 0 : i32
    %c0_i32_1 = arith.constant 0 : i32
    return %c0_i32, %c0_i32_0 : i32, i32
  }
  func.func @transform_3(%arg0: i32) -> (i32, i32) {
    %c0_i32 = arith.constant 0 : i32
    %c0_i32_0 = arith.constant 0 : i32
    %c0_i32_1 = arith.constant 0 : i32
    return %c0_i32, %c0_i32_0 : i32, i32
  }
  func.func @transform_4(%arg0: i32) -> (i32, i32, i32) {
    %c0_i32 = arith.constant 0 : i32
    %c0_i32_0 = arith.constant 0 : i32
    %c0_i32_1 = arith.constant 0 : i32
    return %arg0, %c0_i32, %c0_i32_0 : i32, i32, i32
  }
}

</mosaic_0001>

<llo_original>
// kernel: tpu_custom_call.1
$region0: #{tpu_custom_call.1}
  #allocation0 [shape = 'u32[]', space=smem, size = 0x4, offset = 0x4, fixed_abs, tag = 'smem constant byte address 0x4 - core index']
  #allocation1 [shape = 'u32[144,128]{1,0:T(1,128)}', space=vmem, size = 0x12000, scoped, tag = 'internal scratch']
  %s0 = inlined_call_operand.vmem [shape: f32[4,16,128], index: 0, kind: input, shape index: {}]
  %s1 = inlined_call_operand.hbm [shape: bf16[3,384,128], index: 1, kind: input, shape index: {}]
  %s2 = inlined_call_operand.vmem [shape: f32[11,128], index: 2, kind: input, shape index: {}]
  %s3 = inlined_call_operand.vmem [shape: f32[152,8], index: 3, kind: input, shape index: {}]
  %s4 = inlined_call_operand.hbm [shape: f32[4,16,128], index: 4, kind: output, shape index: {}]
  %s5 = sld [smem:[#allocation0]]
  $region53: #{tpu_custom_call.1} parent=0
    _
  %s7 = ssub.s32 1, %s5
  %s8 = scalar_select 0, %s7, %s5
  $region1: #{tpu_custom_call.1} parent=0
    #allocation2 [shape = 'u8[294912]{0}', space=vmem, size = 0x48000, scoped, tag = 'input window, operand 1, single buffered']
    #allocation3 [shape = 's32[2]{0}', space=sflag, size = 0x8, scoped, tag = 'scoped memory for tpu_custom_call.1']
    #allocation4 [shape = 's32[2]{0}', space=sflag, size = 0x8, scoped, tag = 'scoped memory for tpu_custom_call.1']
    #allocation5 [shape = 'u8[32768]{0}', space=vmem, size = 0x8000, scoped, tag = 'output window, operand 0']
    %9 = vsyncpa [#allocation3], 0
    %10 = vsyncpa [#allocation4], 0
    %s11 = scalar_lea.sflag [#allocation4], 1
    %12 = vsyncpa %s11, 0
    loop: start=0, step=1, limit=4
    $region2: #{tpu_custom_call.1} parent=1 // loop_pre_header
      _
    $region3: #{tpu_custom_call.1} parent=1 // loop_header
      %s14 = sphi 0, %s18
      %p15 = scmp.ge.s32.totalorder %s14, 4
      %s24 = sphi 0, %s26
      %s27 = sphi 0, %s24
      %s28 = sphi 0, %s27
      %s44 = sphi 0, %s28
      %s48 = sphi 0, %s48
      %s50 = sphi 0, %s48
      %s51 = sphi 0, %s50
      %s65 = sphi 0, %s51
      %s69 = sphi 0, %s69
      %s71 = sphi 0, %s69
      %s72 = sphi 0, %s71
      %s86 = sphi 0, %s72
      %s90 = sphi 0, %s90
      %s92 = sphi 0, %s90
      %s93 = sphi 0, %s92
      %s107 = sphi 0, %s93
      %s113 = sphi 0, %s115
      %s116 = sphi 0, %s113
      %s117 = sphi 0, %s116
      %s133 = sphi 0, %s117
    $region4: #{tpu_custom_call.1} parent=1 // loop_header_branch
      %17 = sbr.rel (%p15) target = $region8
    $region5: #{tpu_custom_call.1} parent=1 // loop_body
      %s19 = ssub.s32 %s14, 1
      %s20 = ssub.s32 %s14, 2
      %s21 = sadd.s32 %s14, 1
      %s22 = ssub.s32 %s14, %s21
      %p23 = scmp.eq.s32.totalorder %s22, 0
      %s25 = sadd.s32 %s24, 1
      %s26 = scalar_select %p23, %s24, %s25
      %p29 = pneg %p23
      %p30 = scmp.eq.s32.totalorder %s14, 1
      %p31 = por %p29, %p30
      %p32 = scmp.ne.s32.totalorder %s24, %s27
      %p33 = scmp.eq.s32.totalorder %s14, 0
      %p34 = por %p32, %p33
      %p35 = scmp.ne.s32.totalorder %s24, %s27
      %p36 = scmp.eq.s32.totalorder %s19, 1
      %p37 = por %p35, %p36
      %p38 = scmp.ne.s32.totalorder %s27, %s28
      %p39 = scmp.eq.s32.totalorder %s19, 0
      %p40 = por %p38, %p39
      %p41 = scmp.ne.s32.totalorder %s27, %s28
      %p42 = scmp.eq.s32.totalorder %s20, 1
      %p43 = por %p41, %p42
      %p45 = scmp.ne.s32.totalorder %s28, %s44
      %p46 = scmp.eq.s32.totalorder %s20, 0
      %p47 = por %p45, %p46
      %s49 = sadd.s32 %s48, 1
      %p52 = scmp.eq.s32.totalorder %s14, 1
      %p53 = scmp.ne.s32.totalorder %s48, %s50
      %p54 = scmp.eq.s32.totalorder %s14, 0
      %p55 = por %p53, %p54
      %p56 = scmp.ne.s32.totalorder %s48, %s50
      %p57 = scmp.eq.s32.totalorder %s19, 1
      %p58 = por %p56, %p57
      %p59 = scmp.ne.s32.totalorder %s50, %s51
      %p60 = scmp.eq.s32.totalorder %s19, 0
      %p61 = por %p59, %p60
      %p62 = scmp.ne.s32.totalorder %s50, %s51
      %p63 = scmp.eq.s32.totalorder %s20, 1
      %p64 = por %p62, %p63
      %p66 = scmp.ne.s32.totalorder %s51, %s65
      %p67 = scmp.eq.s32.totalorder %s20, 0
      %p68 = por %p66, %p67
      %s70 = sadd.s32 %s69, 1
      %p73 = scmp.eq.s32.totalorder %s14, 1
      %p74 = scmp.ne.s32.totalorder %s69, %s71
      %p75 = scmp.eq.s32.totalorder %s14, 0
      %p76 = por %p74, %p75
      %p77 = scmp.ne.s32.totalorder %s69, %s71
      %p78 = scmp.eq.s32.totalorder %s19, 1
      %p79 = por %p77, %p78
      %p80 = scmp.ne.s32.totalorder %s71, %s72
      %p81 = scmp.eq.s32.totalorder %s19, 0
      %p82 = por %p80, %p81
      %p83 = scmp.ne.s32.totalorder %s71, %s72
      %p84 = scmp.eq.s32.totalorder %s20, 1
      %p85 = por %p83, %p84
      %p87 = scmp.ne.s32.totalorder %s72, %s86
      %p88 = scmp.eq.s32.totalorder %s20, 0
      %p89 = por %p87, %p88
      %s91 = sadd.s32 %s90, 1
      %p94 = scmp.eq.s32.totalorder %s14, 1
      %p95 = scmp.ne.s32.totalorder %s90, %s92
      %p96 = scmp.eq.s32.totalorder %s14, 0
      %p97 = por %p95, %p96
      %p98 = scmp.ne.s32.totalorder %s90, %s92
      %p99 = scmp.eq.s32.totalorder %s19, 1
      %p100 = por %p98, %p99
      %p101 = scmp.ne.s32.totalorder %s92, %s93
      %p102 = scmp.eq.s32.totalorder %s19, 0
      %p103 = por %p101, %p102
      %p104 = scmp.ne.s32.totalorder %s92, %s93
      %p105 = scmp.eq.s32.totalorder %s20, 1
      %p106 = por %p104, %p105
      %p108 = scmp.ne.s32.totalorder %s93, %s107
      %p109 = scmp.eq.s32.totalorder %s20, 0
      %p110 = por %p108, %p109
      %s111 = ssub.s32 %s14, %s21
      %p112 = scmp.eq.s32.totalorder %s111, 0
      %s114 = sadd.s32 %s113, 1
      %s115 = scalar_select %p112, %s113, %s114
      %p118 = pneg %p112
      %p119 = scmp.eq.s32.totalorder %s14, 1
      %p120 = por %p118, %p119
      %p121 = scmp.ne.s32.totalorder %s113, %s116
      %p122 = scmp.eq.s32.totalorder %s14, 0
      %p123 = por %p121, %p122
      %p124 = scmp.ne.s32.totalorder %s113, %s116
      %p125 = scmp.eq.s32.totalorder %s19, 1
      %p126 = por %p124, %p125
      %p127 = scmp.ne.s32.totalorder %s116, %s117
      %p128 = scmp.eq.s32.totalorder %s19, 0
      %p129 = por %p127, %p128
      %p130 = scmp.ne.s32.totalorder %s116, %s117
      %p131 = scmp.eq.s32.totalorder %s20, 1
      %p132 = por %p130, %p131
      %p134 = scmp.ne.s32.totalorder %s117, %s133
      %p135 = scmp.eq.s32.totalorder %s20, 0
      %p136 = por %p134, %p135
      %p137 = scmp.le.s32.totalorder 1, %s14
      %p138 = scmp.lt.s32.totalorder %s14, 3
      %p139 = pnand %p137, %p138
      %p140 = pneg %p139
      // Predicated region
      $region9: #{tpu_custom_call.1} parent=5 // pred_check
        _
      $region10: #{tpu_custom_call.1} parent=5 // pred_check_branch
        %142 = sbr.rel (%p139) target = $region12
      $region11: #{tpu_custom_call.1} parent=5 // pred_region
        %s143 = ssub.s32 %s14, 1
        // Predicated region
        $region13: #{tpu_custom_call.1} parent=11 // pred_check
          %p144 = pneg %p61
        $region14: #{tpu_custom_call.1} parent=11 // pred_check_branch
          %146 = sbr.rel (%p144) target = $region16
        $region15: #{tpu_custom_call.1} parent=11 // pred_region
          %s148 = ssub.s32 9216, 9216
          %149 = vsyncadd [#allocation3], %s148
          %s150 = sshll.u32 [#allocation2], 4
          %s151 = int_to_ptr.vmem [resolvable:$true] %s150
          %156 = dma.hbm_to_vmem [thread:$0]  %s1, 9216, %s151, [#allocation3], 64, 64, 4
        $region16: #{tpu_custom_call.1} parent=11 // pred_fallthru
          _
        // Predicated region
        $region17: #{tpu_custom_call.1} parent=11 // pred_check
          %p157 = pneg %p82
        $region18: #{tpu_custom_call.1} parent=11 // pred_check_branch
          %159 = sbr.rel (%p157) target = $region20
        $region19: #{tpu_custom_call.1} parent=11 // pred_region
          _
        $region20: #{tpu_custom_call.1} parent=11 // pred_fallthru
          _
        // Predicated region
        $region21: #{tpu_custom_call.1} parent=11 // pred_check
          %p160 = pneg %p103
        $region22: #{tpu_custom_call.1} parent=11 // pred_check_branch
          %162 = sbr.rel (%p160) target = $region24
        $region23: #{tpu_custom_call.1} parent=11 // pred_region
          _
        $region24: #{tpu_custom_call.1} parent=11 // pred_fallthru
          _
      $region12: #{tpu_custom_call.1} parent=5 // pred_fallthru
        _
      %p163 = scmp.lt.s32.totalorder %s14, 2
      // Predicated region
      $region25: #{tpu_custom_call.1} parent=5 // pred_check
        %p164 = pneg %p163
      $region26: #{tpu_custom_call.1} parent=5 // pred_check_branch
        %166 = sbr.rel (%p164) target = $region28
      $region27: #{tpu_custom_call.1} parent=5 // pred_region
        // Predicated region
        $region29: #{tpu_custom_call.1} parent=27 // pred_check
          %p167 = pneg %p34
        $region30: #{tpu_custom_call.1} parent=27 // pred_check_branch
          %169 = sbr.rel (%p167) target = $region32
        $region31: #{tpu_custom_call.1} parent=27 // pred_region
          %s170 = smul.u32 2, %s14
          %p171 = scmp.lt.s32.totalorder %s170, 3
          %s172 = scalar_select %p171, %s170, 3
          %s173 = smul.addr %s172, 2
          %s174 = smul.addr %s173, 8
          %s175 = scalar_lea.vmem %s0, %s174
          %s176 = smul.u32 2, %s14
        $region32: #{tpu_custom_call.1} parent=27 // pred_fallthru
          _
      $region28: #{tpu_custom_call.1} parent=5 // pred_fallthru
        _
      %p177 = scmp.le.s32.totalorder 1, %s14
      %p178 = scmp.lt.s32.totalorder %s14, 3
      %p179 = pnand %p177, %p178
      %p180 = pneg %p179
      // Predicated region
      $region33: #{tpu_custom_call.1} parent=5 // pred_check
        _
      $region34: #{tpu_custom_call.1} parent=5 // pred_check_branch
        %182 = sbr.rel (%p179) target = $region36
      $region35: #{tpu_custom_call.1} parent=5 // pred_region
        %s183 = ssub.s32 %s14, 1
        // Predicated region
        $region37: #{tpu_custom_call.1} parent=35 // pred_check
          %p184 = pneg %p61
        $region38: #{tpu_custom_call.1} parent=35 // pred_check_branch
          %186 = sbr.rel (%p184) target = $region40
        $region39: #{tpu_custom_call.1} parent=35 // pred_region
          %187 = dma.done [#allocation3], 9216
        $region40: #{tpu_custom_call.1} parent=35 // pred_fallthru
          _
        %s188 = smul.u32 2, %s19
        %p189 = scmp.lt.s32.totalorder %s188, 3
        %s190 = scalar_select %p189, %s188, 3
        %s191 = smul.addr %s190, 2
        %s192 = smul.addr %s191, 8
        %s193 = scalar_lea.vmem %s0, %s192
        %p194 = pneg %p40
        %p195 = pneg %p37
        %p196 = pneg %p61
        %p197 = pneg %p58
        %p198 = pneg %p82
        %p199 = pneg %p79
        %p200 = pneg %p103
        %p201 = pneg %p100
        %p202 = pneg %p129
        %p203 = pneg %p126
        %s204 = sand.u32 %s116, 1
        %s205 = scalar_lea.sflag [#allocation4], %s204
        %s206 = sand.u32 %s116, 1
        %s207 = smul.addr %s206, 32
        %s208 = scalar_lea.vmem [#allocation5], %s207
        %s209 = smul.u32 2, %s19
        %p210 = scmp.lt.s32.totalorder %s209, 3
        %s211 = scalar_select %p210, %s209, 3
        %s212 = smul.addr %s211, 2
        %s213 = smul.addr %s212, 8
        %s214 = scalar_lea.vmem %s0, %s213
        %s215 = smul.u32 2, %s19
        %s216 = smul.u32 2, %s19
        %v218 = vld [vmem:[%s214] sm:$0xff]
        %v219 = vld [vmem:[%s214 + $0x8] sm:$0xff]
        %v220 = vld [vmem:[%s214 + $0x10] sm:$0xff]
        %v221 = vld [vmem:[%s214 + $0x18] sm:$0xff]
        %v222 = vld [vmem:[%s2] sm:$0xff]
        %v223 = vld [vmem:[%s2 + $0x8] sm:$0x7]
        %v224 = vld [vmem:[%s3] sm:$0xff]
        %v225 = vld [vmem:[%s3 + $0x8] sm:$0xff]
        %v226 = vld [vmem:[%s3 + $0x10] sm:$0xff]
        %v227 = vld [vmem:[%s3 + $0x18] sm:$0xff]
        %v228 = vld [vmem:[%s3 + $0x20] sm:$0xff]
        %v229 = vld [vmem:[%s3 + $0x28] sm:$0xff]
        %v230 = vld [vmem:[%s3 + $0x30] sm:$0xff]
        %v231 = vld [vmem:[%s3 + $0x38] sm:$0xff]
        %v232 = vld [vmem:[%s3 + $0x40] sm:$0xff]
        %v233 = vld [vmem:[%s3 + $0x48] sm:$0xff]
        %v234 = vld [vmem:[%s3 + $0x50] sm:$0xff]
        %v235 = vld [vmem:[%s3 + $0x58] sm:$0xff]
        %v236 = vld [vmem:[%s3 + $0x60] sm:$0xff]
        %v237 = vld [vmem:[%s3 + $0x68] sm:$0xff]
        %v238 = vld [vmem:[%s3 + $0x70] sm:$0xff]
        %v239 = vld [vmem:[%s3 + $0x78] sm:$0xff]
        %v240 = vld [vmem:[%s3 + $0x80] sm:$0xff]
        %v241 = vld [vmem:[%s3 + $0x88] sm:$0xff]
        %v242 = vld [vmem:[%s3 + $0x90] sm:$0xff]
        %v243 = vlaneseq
        %v244 = vshrl.u32 %v243, 7
        %v245 = vadd.s32 %v244, 8
        %v246 = vadd.s32 %v244, 16
        %v247 = vadd.s32 %v244, 24
        %vm248 = vcmp.lt.s32.totalorder %v244, 0
        %v249 = vsub.s32 0, %v244
        %v250 = vsel %vm248, %v249, %v244
        %v251 = vshrl.u32 %v250, 4
        %v252 = vand.u32 %v250, 15
        %v253 = vsub.s32 0, %v252
        %v254 = vsel %vm248, %v253, %v252
        %vm255 = vcmp.lt.s32.totalorder %v245, 0
        %v256 = vsub.s32 0, %v245
        %v257 = vsel %vm255, %v256, %v245
        %v258 = vshrl.u32 %v257, 4
        %v259 = vand.u32 %v257, 15
        %v260 = vsub.s32 0, %v259
        %v261 = vsel %vm255, %v260, %v259
        %vm262 = vcmp.lt.s32.totalorder %v246, 0
        %v263 = vsub.s32 0, %v246
        %v264 = vsel %vm262, %v263, %v246
        %v265 = vshrl.u32 %v264, 4
        %v266 = vand.u32 %v264, 15
        %v267 = vsub.s32 0, %v266
        %v268 = vsel %vm262, %v267, %v266
        %vm269 = vcmp.lt.s32.totalorder %v247, 0
        %v270 = vsub.s32 0, %v247
        %v271 = vsel %vm269, %v270, %v247
        %v272 = vshrl.u32 %v271, 4
        %v273 = vand.u32 %v271, 15
        %v274 = vsub.s32 0, %v273
        %v275 = vsel %vm269, %v274, %v273
        %vm276 = vcmp.ne.s32.totalorder %v254, 0
        %vm277 = vcmp.ne.s32.totalorder %v261, 0
        %vm278 = vcmp.ne.s32.totalorder %v268, 0
        %vm279 = vcmp.ne.s32.totalorder %v275, 0
        %vm280 = vcmp.lt.s32.totalorder %v254, 0
        %vm281 = vcmp.lt.s32.totalorder %v261, 0
        %vm282 = vcmp.lt.s32.totalorder %v268, 0
        %vm283 = vcmp.lt.s32.totalorder %v275, 0
        %vm284 = vmand %vm280, %vm276
        %vm285 = vmand %vm281, %vm277
        %vm286 = vmand %vm282, %vm278
        %vm287 = vmand %vm283, %vm279
        %v288 = vadd.s32 %v254, 16
        %v289 = vadd.s32 %v261, 16
        %v290 = vadd.s32 %v268, 16
        %v291 = vadd.s32 %v275, 16
        %v292 = vsel %vm284, %v288, %v254
        %v293 = vsel %vm285, %v289, %v261
        %v294 = vsel %vm286, %v290, %v268
        %v295 = vsel %vm287, %v291, %v275
        %vm296 = vcmp.eq.s32.totalorder %v292, 0
        %vm297 = vcmp.eq.s32.totalorder %v293, 0
        %vm298 = vcmp.eq.s32.totalorder %v294, 0
        %vm299 = vcmp.eq.s32.totalorder %v295, 0
        %vm300 = vcmp.eq.s32.totalorder %v292, 15
        %vm301 = vcmp.eq.s32.totalorder %v293, 15
        %vm302 = vcmp.eq.s32.totalorder %v294, 15
        %vm303 = vcmp.eq.s32.totalorder %v295, 15
        %vm308 = vcmask 1040384
        %v309 = vrot.slane %v218, 7
        %v310 = vrot.slane %v219, 7
        %v311 = vsel %vm308, %v309, %v310
        %v312 = vrot.slane %v220, 7
        %v313 = vsel %vm308, %v310, %v312
        %v314 = vrot.slane %v221, 7
        %v315 = vsel %vm308, %v312, %v314
        %v320 = vsel %vm308, %v218, %v309
        %vm321 = vcmask 1046528
        %v322 = vrot.slane %v218, 1
        %v323 = vrot.slane %v219, 1
        %v324 = vsel %vm321, %v322, %v323
        %v325 = vrot.slane %v220, 1
        %v326 = vsel %vm321, %v323, %v325
        %v327 = vrot.slane %v221, 1
        %v328 = vsel %vm321, %v325, %v327
        %v333 = vsel %vm321, %v327, %v221
        %v334 = vsel %vm296, %v324, %v320
        %v335 = vsel %vm297, %v326, %v311
        %v336 = vsel %vm298, %v328, %v313
        %v337 = vsel %vm299, %v333, %v315
        %v338 = vsel %vm300, %v320, %v324
        %v339 = vsel %vm301, %v311, %v326
        %v340 = vsel %vm302, %v313, %v328
        %v341 = vsel %vm303, %v315, %v333
        %v342 = vpack.c.bf16 %v335, %v334
        %v343 = vpack.c.bf16 %v219, %v218
        %v344 = vpack.c.bf16 %v339, %v338
        %v345 = vpack.c.bf16 %v337, %v336
        %v346 = vpack.c.bf16 %v221, %v220
        %v347 = vpack.c.bf16 %v341, %v340
        %v348 = vld [vmem:[#allocation2] sm:$0xf]
        %v349 = vld [vmem:[#allocation2 + $0x4] sm:$0xf]
        %v350 = vld [vmem:[#allocation2 + $0x8] sm:$0xf]
        %v351 = vld [vmem:[#allocation2 + $0xc] sm:$0xf]
        %v352 = vld [vmem:[#allocation2 + $0x10] sm:$0xf]
        %v353 = vld [vmem:[#allocation2 + $0x14] sm:$0xf]
        %v354 = vld [vmem:[#allocation2 + $0x18] sm:$0xf]
        %v355 = vld [vmem:[#allocation2 + $0x1c] sm:$0xf]
        %v356 = vld [vmem:[#allocation2 + $0x20] sm:$0xf]
        %v357 = vld [vmem:[#allocation2 + $0x24] sm:$0xf]
        %v358 = vld [vmem:[#allocation2 + $0x28] sm:$0xf]
        %v359 = vld [vmem:[#allocation2 + $0x2c] sm:$0xf]
        %v360 = vld [vmem:[#allocation2 + $0x30] sm:$0xf]
        %v361 = vld [vmem:[#allocation2 + $0x34] sm:$0xf]
        %v362 = vld [vmem:[#allocation2 + $0x38] sm:$0xf]
        %v363 = vld [vmem:[#allocation2 + $0x3c] sm:$0xf]
        %v364 = vld [vmem:[#allocation2 + $0x40] sm:$0xf]
        %v365 = vld [vmem:[#allocation2 + $0x44] sm:$0xf]
        %v366 = vld [vmem:[#allocation2 + $0x48] sm:$0xf]
        %v367 = vld [vmem:[#allocation2 + $0x4c] sm:$0xf]
        %v368 = vld [vmem:[#allocation2 + $0x50] sm:$0xf]
        %v369 = vld [vmem:[#allocation2 + $0x54] sm:$0xf]
        %v370 = vld [vmem:[#allocation2 + $0x58] sm:$0xf]
        %v371 = vld [vmem:[#allocation2 + $0x5c] sm:$0xf]
        %v372 = vld [vmem:[#allocation2 + $0x60] sm:$0xf]
        %v373 = vld [vmem:[#allocation2 + $0x64] sm:$0xf]
        %v374 = vld [vmem:[#allocation2 + $0x68] sm:$0xf]
        %v375 = vld [vmem:[#allocation2 + $0x6c] sm:$0xf]
        %v376 = vld [vmem:[#allocation2 + $0x70] sm:$0xf]
        %v377 = vld [vmem:[#allocation2 + $0x74] sm:$0xf]
        %v378 = vld [vmem:[#allocation2 + $0x78] sm:$0xf]
        %v379 = vld [vmem:[#allocation2 + $0x7c] sm:$0xf]
        %v380 = vld [vmem:[#allocation2 + $0x80] sm:$0xf]
        %v381 = vld [vmem:[#allocation2 + $0x84] sm:$0xf]
        %v382 = vld [vmem:[#allocation2 + $0x88] sm:$0xf]
        %v383 = vld [vmem:[#allocation2 + $0x8c] sm:$0xf]
        %v384 = vld [vmem:[#allocation2 + $0x90] sm:$0xf]
        %v385 = vld [vmem:[#allocation2 + $0x94] sm:$0xf]
        %v386 = vld [vmem:[#allocation2 + $0x98] sm:$0xf]
        %v387 = vld [vmem:[#allocation2 + $0x9c] sm:$0xf]
        %v388 = vld [vmem:[#allocation2 + $0xa0] sm:$0xf]
        %v389 = vld [vmem:[#allocation2 + $0xa4] sm:$0xf]
        %v390 = vld [vmem:[#allocation2 + $0xa8] sm:$0xf]
        %v391 = vld [vmem:[#allocation2 + $0xac] sm:$0xf]
        %v392 = vld [vmem:[#allocation2 + $0xb0] sm:$0xf]
        %v393 = vld [vmem:[#allocation2 + $0xb4] sm:$0xf]
        %v394 = vld [vmem:[#allocation2 + $0xb8] sm:$0xf]
        %v395 = vld [vmem:[#allocation2 + $0xbc] sm:$0xf]
        %v396 = vlaneseq
        %v397 = vshrl.u32 %v396, 7
        %v398 = vsub.s32 0, %v397
        %v399 = vrot.slane %v223, %v398
        %v448 = vunpack.c.l.b16 %v348
        %v449 = vunpack.c.l.b16 %v349
        %v450 = vunpack.c.l.b16 %v350
        %v451 = vunpack.c.l.b16 %v351
        %v452 = vunpack.c.l.b16 %v352
        %v453 = vunpack.c.l.b16 %v353
        %v454 = vunpack.c.l.b16 %v354
        %v455 = vunpack.c.l.b16 %v355
        %v456 = vunpack.c.l.b16 %v356
        %v457 = vunpack.c.l.b16 %v357
        %v458 = vunpack.c.l.b16 %v358
        %v459 = vunpack.c.l.b16 %v359
        %v460 = vunpack.c.l.b16 %v360
        %v461 = vunpack.c.l.b16 %v361
        %v462 = vunpack.c.l.b16 %v362
        %v463 = vunpack.c.l.b16 %v363
        %v464 = vunpack.c.l.b16 %v364
        %v465 = vunpack.c.l.b16 %v365
        %v466 = vunpack.c.l.b16 %v366
        %v467 = vunpack.c.l.b16 %v367
        %v468 = vunpack.c.l.b16 %v368
        %v469 = vunpack.c.l.b16 %v369
        %v470 = vunpack.c.l.b16 %v370
        %v471 = vunpack.c.l.b16 %v371
        %v472 = vunpack.c.l.b16 %v372
        %v473 = vunpack.c.l.b16 %v373
        %v474 = vunpack.c.l.b16 %v374
        %v475 = vunpack.c.l.b16 %v375
        %v476 = vunpack.c.l.b16 %v376
        %v477 = vunpack.c.l.b16 %v377
        %v478 = vunpack.c.l.b16 %v378
        %v479 = vunpack.c.l.b16 %v379
        %v480 = vunpack.c.l.b16 %v380
        %v481 = vunpack.c.l.b16 %v381
        %v482 = vunpack.c.l.b16 %v382
        %v483 = vunpack.c.l.b16 %v383
        %v484 = vunpack.c.l.b16 %v384
        %v485 = vunpack.c.l.b16 %v385
        %v486 = vunpack.c.l.b16 %v386
        %v487 = vunpack.c.l.b16 %v387
        %v488 = vunpack.c.l.b16 %v388
        %v489 = vunpack.c.l.b16 %v389
        %v490 = vunpack.c.l.b16 %v390
        %v491 = vunpack.c.l.b16 %v391
        %v492 = vunpack.c.l.b16 %v392
        %v493 = vunpack.c.l.b16 %v393
        %v494 = vunpack.c.l.b16 %v394
        %v495 = vunpack.c.l.b16 %v395
        %v496 = vpack.c.b16 %v449, %v448
        %v497 = vpack.c.b16 %v451, %v450
        %v498 = vpack.c.b16 %v453, %v452
        %v499 = vpack.c.b16 %v455, %v454
        %v500 = vpack.c.b16 %v457, %v456
        %v501 = vpack.c.b16 %v459, %v458
        %v502 = vpack.c.b16 %v461, %v460
        %v503 = vpack.c.b16 %v463, %v462
        %v504 = vpack.c.b16 %v465, %v464
        %v505 = vpack.c.b16 %v467, %v466
        %v506 = vpack.c.b16 %v469, %v468
        %v507 = vpack.c.b16 %v471, %v470
        %v508 = vpack.c.b16 %v473, %v472
        %v509 = vpack.c.b16 %v475, %v474
        %v510 = vpack.c.b16 %v477, %v476
        %v511 = vpack.c.b16 %v479, %v478
        %v512 = vpack.c.b16 %v481, %v480
        %v513 = vpack.c.b16 %v483, %v482
        %v514 = vpack.c.b16 %v485, %v484
        %v515 = vpack.c.b16 %v487, %v486
        %v516 = vpack.c.b16 %v489, %v488
        %v517 = vpack.c.b16 %v491, %v490
        %v518 = vpack.c.b16 %v493, %v492
        %v519 = vpack.c.b16 %v495, %v494
        %544 = vmatprep.subr.bf16.mxu0 0
        %545 = vmatpush1.bf16.msra.mxu0 %v496
        %546 = vmatprep.subr.bf16.mxu0 0
        %547 = vmatpush1.bf16.msra.mxu0 %v497
        %548 = vmatprep.subr.bf16.mxu0 0
        %549 = vmatpush1.bf16.msra.mxu0 %v498
        %550 = vmatprep.subr.bf16.mxu0 0
        %551 = vmatpush1.bf16.msra.mxu0 %v499
        %552 = vmatprep.subr.bf16.mxu0 0
        %553 = vmatpush1.bf16.msra.mxu0 %v500
        %554 = vmatprep.subr.bf16.mxu0 0
        %555 = vmatpush1.bf16.msra.mxu0 %v501
        %556 = vmatprep.subr.bf16.mxu0 0
        %557 = vmatpush1.bf16.msra.mxu0 %v502
        %558 = vmatprep.subr.bf16.mxu0 0
        %559 = vmatpush1.bf16.msra.mxu0 %v503
        %560 = vmatprep.subr.bf16.mxu0 0
        %561 = vmatpush1.bf16.msra.mxu0 %v504
        %562 = vmatprep.subr.bf16.mxu0 0
        %563 = vmatpush1.bf16.msra.mxu0 %v505
        %564 = vmatprep.subr.bf16.mxu0 0
        %565 = vmatpush1.bf16.msra.mxu0 %v506
        %566 = vmatprep.subr.bf16.mxu0 0
        %567 = vmatpush1.bf16.msra.mxu0 %v507
        %568 = vmatprep.subr.bf16.mxu0 0
        %569 = vmatpush1.bf16.msra.mxu0 %v508
        %570 = vmatprep.subr.bf16.mxu0 0
        %571 = vmatpush1.bf16.msra.mxu0 %v509
        %572 = vmatprep.subr.bf16.mxu0 0
        %573 = vmatpush1.bf16.msra.mxu0 %v510
        %574 = vmatprep.subr.bf16.mxu0 0
        %575 = vmatpush1.bf16.msra.mxu0 %v511
        %576 = vmatprep.mubr.bf16.mxu0 %v343
        %577 = vmatmul.mubr.bf16.gmra.mrb[0].mxu0 %v342
        %v578 = vpop.f32.mrb[0].mxu0
        %v579 = vadd.f32 %v399, %v578
        %v580 = vpop.f32.mrb[0].mxu0
        %v581 = vpop.f32.mrb[0].mxu0
        %v582 = vadd.f32 %v399, %v581
        %v583 = vpop.f32.mrb[0].mxu0
        %584 = vmatprep.mubr.bf16.mxu0 %v346
        %585 = vmatmul.mubr.bf16.gmra.mrb[0].mxu0 %v345
        %v586 = vpop.f32.mrb[0].mxu0
        %v587 = vadd.f32 %v399, %v586
        %v588 = vpop.f32.mrb[0].mxu0
        %v589 = vpop.f32.mrb[0].mxu0
        %v590 = vadd.f32 %v399, %v589
        %v591 = vpop.f32.mrb[0].mxu0
        %592 = vdwg.mxu0
        %593 = vmatprep.subr.bf16.mxu0 0
        %594 = vmatpush1.bf16.msra.mxu0 %v512
        %595 = vmatprep.subr.bf16.mxu0 0
        %596 = vmatpush1.bf16.msra.mxu0 %v513
        %597 = vmatprep.subr.bf16.mxu0 0
        %598 = vmatpush1.bf16.msra.mxu0 %v514
        %599 = vmatprep.subr.bf16.mxu0 0
        %600 = vmatpush1.bf16.msra.mxu0 %v515
        %601 = vmatprep.subr.bf16.mxu0 0
        %602 = vmatpush1.bf16.msra.mxu0 %v516
        %603 = vmatprep.subr.bf16.mxu0 0
        %604 = vmatpush1.bf16.msra.mxu0 %v517
        %605 = vmatprep.subr.bf16.mxu0 0
        %606 = vmatpush1.bf16.msra.mxu0 %v518
        %607 = vmatprep.subr.bf16.mxu0 0
        %608 = vmatpush1.bf16.msra.mxu0 %v519
        %609 = vmatprep.subr.bf16.mxu0 0
        %610 = vmatpush1.bf16.msra.mxu0 0
        %611 = vmatprep.subr.bf16.mxu0 0
        %612 = vmatpush1.bf16.msra.mxu0 0
        %613 = vmatprep.subr.bf16.mxu0 0
        %614 = vmatpush1.bf16.msra.mxu0 0
        %615 = vmatprep.subr.bf16.mxu0 0
        %616 = vmatpush1.bf16.msra.mxu0 0
        %617 = vmatprep.subr.bf16.mxu0 0
        %618 = vmatpush1.bf16.msra.mxu0 0
        %619 = vmatprep.subr.bf16.mxu0 0
        %620 = vmatpush1.bf16.msra.mxu0 0
        %621 = vmatprep.subr.bf16.mxu0 0
        %622 = vmatpush1.bf16.msra.mxu0 0
        %623 = vmatprep.subr.bf16.mxu0 0
        %624 = vmatpush1.bf16.msra.mxu0 0
        %625 = vmatprep.mubr.bf16.mxu0 0
        %626 = vmatmul.mubr.bf16.gmra.mrb[0].mxu0 %v344
        %v627 = vpop.f32.mrb[0].mxu0
        %v628 = vadd.f32 %v579, %v627
        %v629 = vpop.f32.mrb[0].mxu0
        %v630 = vpop.f32.mrb[0].mxu0
        %v631 = vadd.f32 %v582, %v630
        %v632 = vpop.f32.mrb[0].mxu0
        %633 = vmatprep.mubr.bf16.mxu0 0
        %634 = vmatmul.mubr.bf16.gmra.mrb[0].mxu0 %v347
        %v635 = vpop.f32.mrb[0].mxu0
        %v636 = vadd.f32 %v587, %v635
        %v637 = vpop.f32.mrb[0].mxu0
        %v638 = vpop.f32.mrb[0].mxu0
        %v639 = vadd.f32 %v590, %v638
        %v640 = vpop.f32.mrb[0].mxu0
        %641 = vdwg.mxu0
        %vm642 = vcmp.ge.f32.partialorder %v628, 0.0
        %vm643 = vcmp.ge.f32.partialorder %v631, 0.0
        %vm644 = vcmp.ge.f32.partialorder %v636, 0.0
        %vm645 = vcmp.ge.f32.partialorder %v639, 0.0
        %v646 = vmul.f32 %v628, 0.2
        %v647 = vmul.f32 %v631, 0.2
        %v648 = vmul.f32 %v636, 0.2
        %v649 = vmul.f32 %v639, 0.2
        %v650 = vsel %vm642, %v628, %v646
        %v651 = vsel %vm643, %v631, %v647
        %v652 = vsel %vm644, %v636, %v648
        %v653 = vsel %vm645, %v639, %v649
        %v658 = vrot.slane %v650, 7
        %v659 = vrot.slane %v651, 7
        %v660 = vsel %vm308, %v658, %v659
        %v661 = vrot.slane %v652, 7
        %v662 = vsel %vm308, %v659, %v661
        %v663 = vrot.slane %v653, 7
        %v664 = vsel %vm308, %v661, %v663
        %v669 = vsel %vm308, %v650, %v658
        %v670 = vrot.slane %v650, 1
        %v671 = vrot.slane %v651, 1
        %v672 = vsel %vm321, %v670, %v671
        %v673 = vrot.slane %v652, 1
        %v674 = vsel %vm321, %v671, %v673
        %v675 = vrot.slane %v653, 1
        %v676 = vsel %vm321, %v673, %v675
        %v681 = vsel %vm321, %v675, %v653
        %v682 = vsel %vm296, %v672, %v669
        %v683 = vsel %vm297, %v674, %v660
        %v684 = vsel %vm298, %v676, %v662
        %v685 = vsel %vm299, %v681, %v664
        %v686 = vsel %vm300, %v669, %v672
        %v687 = vsel %vm301, %v660, %v674
        %v688 = vsel %vm302, %v662, %v676
        %v689 = vsel %vm303, %v664, %v681
        %v690 = vpack.c.bf16 %v683, %v682
        %v691 = vpack.c.bf16 %v651, %v650
        %v692 = vpack.c.bf16 %v687, %v686
        %v693 = vpack.c.bf16 %v685, %v684
        %v694 = vpack.c.bf16 %v653, %v652
        %v695 = vpack.c.bf16 %v689, %v688
        %s696 = scalar_lea.vmem [#allocation2], 192
        %v697 = vld [vmem:[%s696] sm:$0xf]
        %v698 = vld [vmem:[%s696 + $0x4] sm:$0xf]
        %v699 = vld [vmem:[%s696 + $0x8] sm:$0xf]
        %v700 = vld [vmem:[%s696 + $0xc] sm:$0xf]
        %v701 = vld [vmem:[%s696 + $0x10] sm:$0xf]
        %v702 = vld [vmem:[%s696 + $0x14] sm:$0xf]
        %v703 = vld [vmem:[%s696 + $0x18] sm:$0xf]
        %v704 = vld [vmem:[%s696 + $0x1c] sm:$0xf]
        %v705 = vld [vmem:[%s696 + $0x20] sm:$0xf]
        %v706 = vld [vmem:[%s696 + $0x24] sm:$0xf]
        %v707 = vld [vmem:[%s696 + $0x28] sm:$0xf]
        %v708 = vld [vmem:[%s696 + $0x2c] sm:$0xf]
        %v709 = vld [vmem:[%s696 + $0x30] sm:$0xf]
        %v710 = vld [vmem:[%s696 + $0x34] sm:$0xf]
        %v711 = vld [vmem:[%s696 + $0x38] sm:$0xf]
        %v712 = vld [vmem:[%s696 + $0x3c] sm:$0xf]
        %v713 = vld [vmem:[%s696 + $0x40] sm:$0xf]
        %v714 = vld [vmem:[%s696 + $0x44] sm:$0xf]
        %v715 = vld [vmem:[%s696 + $0x48] sm:$0xf]
        %v716 = vld [vmem:[%s696 + $0x4c] sm:$0xf]
        %v717 = vld [vmem:[%s696 + $0x50] sm:$0xf]
        %v718 = vld [vmem:[%s696 + $0x54] sm:$0xf]
        %v719 = vld [vmem:[%s696 + $0x58] sm:$0xf]
        %v720 = vld [vmem:[%s696 + $0x5c] sm:$0xf]
        %v721 = vld [vmem:[%s696 + $0x60] sm:$0xf]
        %v722 = vld [vmem:[%s696 + $0x64] sm:$0xf]
        %v723 = vld [vmem:[%s696 + $0x68] sm:$0xf]
        %v724 = vld [vmem:[%s696 + $0x6c] sm:$0xf]
        %v725 = vld [vmem:[%s696 + $0x70] sm:$0xf]
        %v726 = vld [vmem:[%s696 + $0x74] sm:$0xf]
        %v727 = vld [vmem:[%s696 + $0x78] sm:$0xf]
        %v728 = vld [vmem:[%s696 + $0x7c] sm:$0xf]
        %v729 = vld [vmem:[%s696 + $0x80] sm:$0xf]
        %v730 = vld [vmem:[%s696 + $0x84] sm:$0xf]
        %v731 = vld [vmem:[%s696 + $0x88] sm:$0xf]
        %v732 = vld [vmem:[%s696 + $0x8c] sm:$0xf]
        %v733 = vld [vmem:[%s696 + $0x90] sm:$0xf]
        %v734 = vld [vmem:[%s696 + $0x94] sm:$0xf]
        %v735 = vld [vmem:[%s696 + $0x98] sm:$0xf]
        %v736 = vld [vmem:[%s696 + $0x9c] sm:$0xf]
        %v737 = vld [vmem:[%s696 + $0xa0] sm:$0xf]
        %v738 = vld [vmem:[%s696 + $0xa4] sm:$0xf]
        %v739 = vld [vmem:[%s696 + $0xa8] sm:$0xf]
        %v740 = vld [vmem:[%s696 + $0xac] sm:$0xf]
        %v741 = vld [vmem:[%s696 + $0xb0] sm:$0xf]
        %v742 = vld [vmem:[%s696 + $0xb4] sm:$0xf]
        %v743 = vld [vmem:[%s696 + $0xb8] sm:$0xf]
        %v744 = vld [vmem:[%s696 + $0xbc] sm:$0xf]
        %v745 = vlaneseq
        %v746 = vshrl.u32 %v745, 7
        %v747 = vsub.s32 1, %v746
        %v748 = vrot.slane %v223, %v747
        %v797 = vunpack.c.l.b16 %v697
        %v798 = vunpack.c.l.b16 %v698
        %v799 = vunpack.c.l.b16 %v699
        %v800 = vunpack.c.l.b16 %v700
        %v801 = vunpack.c.l.b16 %v701
        %v802 = vunpack.c.l.b16 %v702
        %v803 = vunpack.c.l.b16 %v703
        %v804 = vunpack.c.l.b16 %v704
        %v805 = vunpack.c.l.b16 %v705
        %v806 = vunpack.c.l.b16 %v706
        %v807 = vunpack.c.l.b16 %v707
        %v808 = vunpack.c.l.b16 %v708
        %v809 = vunpack.c.l.b16 %v709
        %v810 = vunpack.c.l.b16 %v710
        %v811 = vunpack.c.l.b16 %v711
        %v812 = vunpack.c.l.b16 %v712
        %v813 = vunpack.c.l.b16 %v713
        %v814 = vunpack.c.l.b16 %v714
        %v815 = vunpack.c.l.b16 %v715
        %v816 = vunpack.c.l.b16 %v716
        %v817 = vunpack.c.l.b16 %v717
        %v818 = vunpack.c.l.b16 %v718
        %v819 = vunpack.c.l.b16 %v719
        %v820 = vunpack.c.l.b16 %v720
        %v821 = vunpack.c.l.b16 %v721
        %v822 = vunpack.c.l.b16 %v722
        %v823 = vunpack.c.l.b16 %v723
        %v824 = vunpack.c.l.b16 %v724
        %v825 = vunpack.c.l.b16 %v725
        %v826 = vunpack.c.l.b16 %v726
        %v827 = vunpack.c.l.b16 %v727
        %v828 = vunpack.c.l.b16 %v728
        %v829 = vunpack.c.l.b16 %v729
        %v830 = vunpack.c.l.b16 %v730
        %v831 = vunpack.c.l.b16 %v731
        %v832 = vunpack.c.l.b16 %v732
        %v833 = vunpack.c.l.b16 %v733
        %v834 = vunpack.c.l.b16 %v734
        %v835 = vunpack.c.l.b16 %v735
        %v836 = vunpack.c.l.b16 %v736
        %v837 = vunpack.c.l.b16 %v737
        %v838 = vunpack.c.l.b16 %v738
        %v839 = vunpack.c.l.b16 %v739
        %v840 = vunpack.c.l.b16 %v740
        %v841 = vunpack.c.l.b16 %v741
        %v842 = vunpack.c.l.b16 %v742
        %v843 = vunpack.c.l.b16 %v743
        %v844 = vunpack.c.l.b16 %v744
        %v845 = vpack.c.b16 %v798, %v797
        %v846 = vpack.c.b16 %v800, %v799
        %v847 = vpack.c.b16 %v802, %v801
        %v848 = vpack.c.b16 %v804, %v803
        %v849 = vpack.c.b16 %v806, %v805
        %v850 = vpack.c.b16 %v808, %v807
        %v851 = vpack.c.b16 %v810, %v809
        %v852 = vpack.c.b16 %v812, %v811
        %v853 = vpack.c.b16 %v814, %v813
        %v854 = vpack.c.b16 %v816, %v815
        %v855 = vpack.c.b16 %v818, %v817
        %v856 = vpack.c.b16 %v820, %v819
        %v857 = vpack.c.b16 %v822, %v821
        %v858 = vpack.c.b16 %v824, %v823
        %v859 = vpack.c.b16 %v826, %v825
        %v860 = vpack.c.b16 %v828, %v827
        %v861 = vpack.c.b16 %v830, %v829
        %v862 = vpack.c.b16 %v832, %v831
        %v863 = vpack.c.b16 %v834, %v833
        %v864 = vpack.c.b16 %v836, %v835
        %v865 = vpack.c.b16 %v838, %v837
        %v866 = vpack.c.b16 %v840, %v839
        %v867 = vpack.c.b16 %v842, %v841
        %v868 = vpack.c.b16 %v844, %v843
        %893 = vmatprep.subr.bf16.mxu0 0
        %894 = vmatpush1.bf16.msra.mxu0 %v845
        %895 = vmatprep.subr.bf16.mxu0 0
        %896 = vmatpush1.bf16.msra.mxu0 %v846
        %897 = vmatprep.subr.bf16.mxu0 0
        %898 = vmatpush1.bf16.msra.mxu0 %v847
        %899 = vmatprep.subr.bf16.mxu0 0
        %900 = vmatpush1.bf16.msra.mxu0 %v848
        %901 = vmatprep.subr.bf16.mxu0 0
        %902 = vmatpush1.bf16.msra.mxu0 %v849
        %903 = vmatprep.subr.bf16.mxu0 0
        %904 = vmatpush1.bf16.msra.mxu0 %v850
        %905 = vmatprep.subr.bf16.mxu0 0
        %906 = vmatpush1.bf16.msra.mxu0 %v851
        %907 = vmatprep.subr.bf16.mxu0 0
        %908 = vmatpush1.bf16.msra.mxu0 %v852
        %909 = vmatprep.subr.bf16.mxu0 0
        %910 = vmatpush1.bf16.msra.mxu0 %v853
        %911 = vmatprep.subr.bf16.mxu0 0
        %912 = vmatpush1.bf16.msra.mxu0 %v854
        %913 = vmatprep.subr.bf16.mxu0 0
        %914 = vmatpush1.bf16.msra.mxu0 %v855
        %915 = vmatprep.subr.bf16.mxu0 0
        %916 = vmatpush1.bf16.msra.mxu0 %v856
        %917 = vmatprep.subr.bf16.mxu0 0
        %918 = vmatpush1.bf16.msra.mxu0 %v857
        %919 = vmatprep.subr.bf16.mxu0 0
        %920 = vmatpush1.bf16.msra.mxu0 %v858
        %921 = vmatprep.subr.bf16.mxu0 0
        %922 = vmatpush1.bf16.msra.mxu0 %v859
        %923 = vmatprep.subr.bf16.mxu0 0
        %924 = vmatpush1.bf16.msra.mxu0 %v860
        %925 = vmatprep.mubr.bf16.mxu0 %v691
        %926 = vmatmul.mubr.bf16.gmra.mrb[0].mxu0 %v690
        %v927 = vpop.f32.mrb[0].mxu0
        %v928 = vadd.f32 %v748, %v927
        %v929 = vpop.f32.mrb[0].mxu0
        %v930 = vpop.f32.mrb[0].mxu0
        %v931 = vadd.f32 %v748, %v930
        %v932 = vpop.f32.mrb[0].mxu0
        %933 = vmatprep.mubr.bf16.mxu0 %v694
        %934 = vmatmul.mubr.bf16.gmra.mrb[0].mxu0 %v693
        %v935 = vpop.f32.mrb[0].mxu0
        %v936 = vadd.f32 %v748, %v935
        %v937 = vpop.f32.mrb[0].mxu0
        %v938 = vpop.f32.mrb[0].mxu0
        %v939 = vadd.f32 %v748, %v938
        %v940 = vpop.f32.mrb[0].mxu0
        %941 = vdwg.mxu0
        %942 = vmatprep.subr.bf16.mxu0 0
        %943 = vmatpush1.bf16.msra.mxu0 %v861
        %944 = vmatprep.subr.bf16.mxu0 0
        %945 = vmatpush1.bf16.msra.mxu0 %v862
        %946 = vmatprep.subr.bf16.mxu0 0
        %947 = vmatpush1.bf16.msra.mxu0 %v863
        %948 = vmatprep.subr.bf16.mxu0 0
        %949 = vmatpush1.bf16.msra.mxu0 %v864
        %950 = vmatprep.subr.bf16.mxu0 0
        %951 = vmatpush1.bf16.msra.mxu0 %v865
        %952 = vmatprep.subr.bf16.mxu0 0
        %953 = vmatpush1.bf16.msra.mxu0 %v866
        %954 = vmatprep.subr.bf16.mxu0 0
        %955 = vmatpush1.bf16.msra.mxu0 %v867
        %956 = vmatprep.subr.bf16.mxu0 0
        %957 = vmatpush1.bf16.msra.mxu0 %v868
        %958 = vmatprep.subr.bf16.mxu0 0
        %959 = vmatpush1.bf16.msra.mxu0 0
        %960 = vmatprep.subr.bf16.mxu0 0
        %961 = vmatpush1.bf16.msra.mxu0 0
        %962 = vmatprep.subr.bf16.mxu0 0
        %963 = vmatpush1.bf16.msra.mxu0 0
        %964 = vmatprep.subr.bf16.mxu0 0
        %965 = vmatpush1.bf16.msra.mxu0 0
        %966 = vmatprep.subr.bf16.mxu0 0
        %967 = vmatpush1.bf16.msra.mxu0 0
        %968 = vmatprep.subr.bf16.mxu0 0
        %969 = vmatpush1.bf16.msra.mxu0 0
        %970 = vmatprep.subr.bf16.mxu0 0
        %971 = vmatpush1.bf16.msra.mxu0 0
        %972 = vmatprep.subr.bf16.mxu0 0
        %973 = vmatpush1.bf16.msra.mxu0 0
        %974 = vmatprep.mubr.bf16.mxu0 0
        %975 = vmatmul.mubr.bf16.gmra.mrb[0].mxu0 %v692
        %v976 = vpop.f32.mrb[0].mxu0
        %v977 = vadd.f32 %v928, %v976
        %v978 = vpop.f32.mrb[0].mxu0
        %v979 = vpop.f32.mrb[0].mxu0
        %v980 = vadd.f32 %v931, %v979
        %v981 = vpop.f32.mrb[0].mxu0
        %982 = vmatprep.mubr.bf16.mxu0 0
        %983 = vmatmul.mubr.bf16.gmra.mrb[0].mxu0 %v695
        %v984 = vpop.f32.mrb[0].mxu0
        %v985 = vadd.f32 %v936, %v984
        %v986 = vpop.f32.mrb[0].mxu0
        %v987 = vpop.f32.mrb[0].mxu0
        %v988 = vadd.f32 %v939, %v987
        %v989 = vpop.f32.mrb[0].mxu0
        %990 = vdwg.mxu0
        %v991 = vadd.f32 %v977, %v218
        %v992 = vadd.f32 %v980, %v219
        %v993 = vadd.f32 %v985, %v220
        %v994 = vadd.f32 %v988, %v221
        %v999 = vrot.slane %v991, 7
        %v1000 = vrot.slane %v992, 7
        %v1001 = vsel %vm308, %v999, %v1000
        %v1002 = vrot.slane %v993, 7
        %v1003 = vsel %vm308, %v1000, %v1002
        %v1004 = vrot.slane %v994, 7
        %v1005 = vsel %vm308, %v1002, %v1004
        %v1010 = vsel %vm308, %v991, %v999
        %v1011 = vrot.slane %v991, 1
        %v1012 = vrot.slane %v992, 1
        %v1013 = vsel %vm321, %v1011, %v1012
        %v1014 = vrot.slane %v993, 1
        %v1015 = vsel %vm321, %v1012, %v1014
        %v1016 = vrot.slane %v994, 1
        %v1017 = vsel %vm321, %v1014, %v1016
        %v1022 = vsel %vm321, %v1016, %v994
        %v1023 = vsel %vm296, %v1013, %v1010
        %v1024 = vsel %vm297, %v1015, %v1001
        %v1025 = vsel %vm298, %v1017, %v1003
        %v1026 = vsel %vm299, %v1022, %v1005
        %v1027 = vsel %vm300, %v1010, %v1013
        %v1028 = vsel %vm301, %v1001, %v1015
        %v1029 = vsel %vm302, %v1003, %v1017
        %v1030 = vsel %vm303, %v1005, %v1022
        %v1031 = vpack.c.bf16 %v1024, %v1023
        %v1032 = vpack.c.bf16 %v992, %v991
        %v1033 = vpack.c.bf16 %v1028, %v1027
        %v1034 = vpack.c.bf16 %v1026, %v1025
        %v1035 = vpack.c.bf16 %v994, %v993
        %v1036 = vpack.c.bf16 %v1030, %v1029
        %s1037 = scalar_lea.vmem [#allocation2], 384
        %v1038 = vld [vmem:[%s1037] sm:$0xf]
        %v1039 = vld [vmem:[%s1037 + $0x4] sm:$0xf]
        %v1040 = vld [vmem:[%s1037 + $0x8] sm:$0xf]
        %v1041 = vld [vmem:[%s1037 + $0xc] sm:$0xf]
        %v1042 = vld [vmem:[%s1037 + $0x10] sm:$0xf]
        %v1043 = vld [vmem:[%s1037 + $0x14] sm:$0xf]
        %v1044 = vld [vmem:[%s1037 + $0x18] sm:$0xf]
        %v1045 = vld [vmem:[%s1037 + $0x1c] sm:$0xf]
        %v1046 = vld [vmem:[%s1037 + $0x20] sm:$0xf]
        %v1047 = vld [vmem:[%s1037 + $0x24] sm:$0xf]
        %v1048 = vld [vmem:[%s1037 + $0x28] sm:$0xf]
        %v1049 = vld [vmem:[%s1037 + $0x2c] sm:$0xf]
        %v1050 = vld [vmem:[%s1037 + $0x30] sm:$0xf]
        %v1051 = vld [vmem:[%s1037 + $0x34] sm:$0xf]
        %v1052 = vld [vmem:[%s1037 + $0x38] sm:$0xf]
        %v1053 = vld [vmem:[%s1037 + $0x3c] sm:$0xf]
        %v1054 = vld [vmem:[%s1037 + $0x40] sm:$0xf]
        %v1055 = vld [vmem:[%s1037 + $0x44] sm:$0xf]
        %v1056 = vld [vmem:[%s1037 + $0x48] sm:$0xf]
        %v1057 = vld [vmem:[%s1037 + $0x4c] sm:$0xf]
        %v1058 = vld [vmem:[%s1037 + $0x50] sm:$0xf]
        %v1059 = vld [vmem:[%s1037 + $0x54] sm:$0xf]
        %v1060 = vld [vmem:[%s1037 + $0x58] sm:$0xf]
        %v1061 = vld [vmem:[%s1037 + $0x5c] sm:$0xf]
        %v1062 = vld [vmem:[%s1037 + $0x60] sm:$0xf]
        %v1063 = vld [vmem:[%s1037 + $0x64] sm:$0xf]
        %v1064 = vld [vmem:[%s1037 + $0x68] sm:$0xf]
        %v1065 = vld [vmem:[%s1037 + $0x6c] sm:$0xf]
        %v1066 = vld [vmem:[%s1037 + $0x70] sm:$0xf]
        %v1067 = vld [vmem:[%s1037 + $0x74] sm:$0xf]
        %v1068 = vld [vmem:[%s1037 + $0x78] sm:$0xf]
        %v1069 = vld [vmem:[%s1037 + $0x7c] sm:$0xf]
        %v1070 = vld [vmem:[%s1037 + $0x80] sm:$0xf]
        %v1071 = vld [vmem:[%s1037 + $0x84] sm:$0xf]
        %v1072 = vld [vmem:[%s1037 + $0x88] sm:$0xf]
        %v1073 = vld [vmem:[%s1037 + $0x8c] sm:$0xf]
        %v1074 = vld [vmem:[%s1037 + $0x90] sm:$0xf]
        %v1075 = vld [vmem:[%s1037 + $0x94] sm:$0xf]
        %v1076 = vld [vmem:[%s1037 + $0x98] sm:$0xf]
        %v1077 = vld [vmem:[%s1037 + $0x9c] sm:$0xf]
        %v1078 = vld [vmem:[%s1037 + $0xa0] sm:$0xf]
        %v1079 = vld [vmem:[%s1037 + $0xa4] sm:$0xf]
        %v1080 = vld [vmem:[%s1037 + $0xa8] sm:$0xf]
        %v1081 = vld [vmem:[%s1037 + $0xac] sm:$0xf]
        %v1082 = vld [vmem:[%s1037 + $0xb0] sm:$0xf]
        %v1083 = vld [vmem:[%s1037 + $0xb4] sm:$0xf]
        %v1084 = vld [vmem:[%s1037 + $0xb8] sm:$0xf]
        %v1085 = vld [vmem:[%s1037 + $0xbc] sm:$0xf]
        %v1086 = vlaneseq
        %v1087 = vshrl.u32 %v1086, 7
        %v1088 = vsub.s32 2, %v1087
        %v1089 = vrot.slane %v223, %v1088
        %v1138 = vunpack.c.l.b16 %v1038
        %v1139 = vunpack.c.l.b16 %v1039
        %v1140 = vunpack.c.l.b16 %v1040
        %v1141 = vunpack.c.l.b16 %v1041
        %v1142 = vunpack.c.l.b16 %v1042
        %v1143 = vunpack.c.l.b16 %v1043
        %v1144 = vunpack.c.l.b16 %v1044
        %v1145 = vunpack.c.l.b16 %v1045
        %v1146 = vunpack.c.l.b16 %v1046
        %v1147 = vunpack.c.l.b16 %v1047
        %v1148 = vunpack.c.l.b16 %v1048
        %v1149 = vunpack.c.l.b16 %v1049
        %v1150 = vunpack.c.l.b16 %v1050
        %v1151 = vunpack.c.l.b16 %v1051
        %v1152 = vunpack.c.l.b16 %v1052
        %v1153 = vunpack.c.l.b16 %v1053
        %v1154 = vunpack.c.l.b16 %v1054
        %v1155 = vunpack.c.l.b16 %v1055
        %v1156 = vunpack.c.l.b16 %v1056
        %v1157 = vunpack.c.l.b16 %v1057
        %v1158 = vunpack.c.l.b16 %v1058
        %v1159 = vunpack.c.l.b16 %v1059
        %v1160 = vunpack.c.l.b16 %v1060
        %v1161 = vunpack.c.l.b16 %v1061
        %v1162 = vunpack.c.l.b16 %v1062
        %v1163 = vunpack.c.l.b16 %v1063
        %v1164 = vunpack.c.l.b16 %v1064
        %v1165 = vunpack.c.l.b16 %v1065
        %v1166 = vunpack.c.l.b16 %v1066
        %v1167 = vunpack.c.l.b16 %v1067
        %v1168 = vunpack.c.l.b16 %v1068
        %v1169 = vunpack.c.l.b16 %v1069
        %v1170 = vunpack.c.l.b16 %v1070
        %v1171 = vunpack.c.l.b16 %v1071
        %v1172 = vunpack.c.l.b16 %v1072
        %v1173 = vunpack.c.l.b16 %v1073
        %v1174 = vunpack.c.l.b16 %v1074
        %v1175 = vunpack.c.l.b16 %v1075
        %v1176 = vunpack.c.l.b16 %v1076
        %v1177 = vunpack.c.l.b16 %v1077
        %v1178 = vunpack.c.l.b16 %v1078
        %v1179 = vunpack.c.l.b16 %v1079
        %v1180 = vunpack.c.l.b16 %v1080
        %v1181 = vunpack.c.l.b16 %v1081
        %v1182 = vunpack.c.l.b16 %v1082
        %v1183 = vunpack.c.l.b16 %v1083
        %v1184 = vunpack.c.l.b16 %v1084
        %v1185 = vunpack.c.l.b16 %v1085
        %v1186 = vpack.c.b16 %v1139, %v1138
        %v1187 = vpack.c.b16 %v1141, %v1140
        %v1188 = vpack.c.b16 %v1143, %v1142
        %v1189 = vpack.c.b16 %v1145, %v1144
        %v1190 = vpack.c.b16 %v1147, %v1146
        %v1191 = vpack.c.b16 %v1149, %v1148
        %v1192 = vpack.c.b16 %v1151, %v1150
        %v1193 = vpack.c.b16 %v1153, %v1152
        %v1194 = vpack.c.b16 %v1155, %v1154
        %v1195 = vpack.c.b16 %v1157, %v1156
        %v1196 = vpack.c.b16 %v1159, %v1158
        %v1197 = vpack.c.b16 %v1161, %v1160
        %v1198 = vpack.c.b16 %v1163, %v1162
        %v1199 = vpack.c.b16 %v1165, %v1164
        %v1200 = vpack.c.b16 %v1167, %v1166
        %v1201 = vpack.c.b16 %v1169, %v1168
        %v1202 = vpack.c.b16 %v1171, %v1170
        %v1203 = vpack.c.b16 %v1173, %v1172
        %v1204 = vpack.c.b16 %v1175, %v1174
        %v1205 = vpack.c.b16 %v1177, %v1176
        %v1206 = vpack.c.b16 %v1179, %v1178
        %v1207 = vpack.c.b16 %v1181, %v1180
        %v1208 = vpack.c.b16 %v1183, %v1182
        %v1209 = vpack.c.b16 %v1185, %v1184
        %1234 = vmatprep.subr.bf16.mxu0 0
        %1235 = vmatpush1.bf16.msra.mxu0 %v1186
        %1236 = vmatprep.subr.bf16.mxu0 0
        %1237 = vmatpush1.bf16.msra.mxu0 %v1187
        %1238 = vmatprep.subr.bf16.mxu0 0
        %1239 = vmatpush1.bf16.msra.mxu0 %v1188
        %1240 = vmatprep.subr.bf16.mxu0 0
        %1241 = vmatpush1.bf16.msra.mxu0 %v1189
        %1242 = vmatprep.subr.bf16.mxu0 0
        %1243 = vmatpush1.bf16.msra.mxu0 %v1190
        %1244 = vmatprep.subr.bf16.mxu0 0
        %1245 = vmatpush1.bf16.msra.mxu0 %v1191
        %1246 = vmatprep.subr.bf16.mxu0 0
        %1247 = vmatpush1.bf16.msra.mxu0 %v1192
        %1248 = vmatprep.subr.bf16.mxu0 0
        %1249 = vmatpush1.bf16.msra.mxu0 %v1193
        %1250 = vmatprep.subr.bf16.mxu0 0
        %1251 = vmatpush1.bf16.msra.mxu0 %v1194
        %1252 = vmatprep.subr.bf16.mxu0 0
        %1253 = vmatpush1.bf16.msra.mxu0 %v1195
        %1254 = vmatprep.subr.bf16.mxu0 0
        %1255 = vmatpush1.bf16.msra.mxu0 %v1196
        %1256 = vmatprep.subr.bf16.mxu0 0
        %1257 = vmatpush1.bf16.msra.mxu0 %v1197
        %1258 = vmatprep.subr.bf16.mxu0 0
        %1259 = vmatpush1.bf16.msra.mxu0 %v1198
        %1260 = vmatprep.subr.bf16.mxu0 0
        %1261 = vmatpush1.bf16.msra.mxu0 %v1199
        %1262 = vmatprep.subr.bf16.mxu0 0
        %1263 = vmatpush1.bf16.msra.mxu0 %v1200
        %1264 = vmatprep.subr.bf16.mxu0 0
        %1265 = vmatpush1.bf16.msra.mxu0 %v1201
        %1266 = vmatprep.mubr.bf16.mxu0 %v1032
        %1267 = vmatmul.mubr.bf16.gmra.mrb[0].mxu0 %v1031
        %v1268 = vpop.f32.mrb[0].mxu0
        %v1269 = vadd.f32 %v1089, %v1268
        %v1270 = vpop.f32.mrb[0].mxu0
        %v1271 = vpop.f32.mrb[0].mxu0
        %v1272 = vadd.f32 %v1089, %v1271
        %v1273 = vpop.f32.mrb[0].mxu0
        %1274 = vmatprep.mubr.bf16.mxu0 %v1035
        %1275 = vmatmul.mubr.bf16.gmra.mrb[0].mxu0 %v1034
        %v1276 = vpop.f32.mrb[0].mxu0
        %v1277 = vadd.f32 %v1089, %v1276
        %v1278 = vpop.f32.mrb[0].mxu0
        %v1279 = vpop.f32.mrb[0].mxu0
        %v1280 = vadd.f32 %v1089, %v1279
        %v1281 = vpop.f32.mrb[0].mxu0
        %1282 = vdwg.mxu0
        %1283 = vmatprep.subr.bf16.mxu0 0
        %1284 = vmatpush1.bf16.msra.mxu0 %v1202
        %1285 = vmatprep.subr.bf16.mxu0 0
        %1286 = vmatpush1.bf16.msra.mxu0 %v1203
        %1287 = vmatprep.subr.bf16.mxu0 0
        %1288 = vmatpush1.bf16.msra.mxu0 %v1204
        %1289 = vmatprep.subr.bf16.mxu0 0
        %1290 = vmatpush1.bf16.msra.mxu0 %v1205
        %1291 = vmatprep.subr.bf16.mxu0 0
        %1292 = vmatpush1.bf16.msra.mxu0 %v1206
        %1293 = vmatprep.subr.bf16.mxu0 0
        %1294 = vmatpush1.bf16.msra.mxu0 %v1207
        %1295 = vmatprep.subr.bf16.mxu0 0
        %1296 = vmatpush1.bf16.msra.mxu0 %v1208
        %1297 = vmatprep.subr.bf16.mxu0 0
        %1298 = vmatpush1.bf16.msra.mxu0 %v1209
        %1299 = vmatprep.subr.bf16.mxu0 0
        %1300 = vmatpush1.bf16.msra.mxu0 0
        %1301 = vmatprep.subr.bf16.mxu0 0
        %1302 = vmatpush1.bf16.msra.mxu0 0
        %1303 = vmatprep.subr.bf16.mxu0 0
        %1304 = vmatpush1.bf16.msra.mxu0 0
        %1305 = vmatprep.subr.bf16.mxu0 0
        %1306 = vmatpush1.bf16.msra.mxu0 0
        %1307 = vmatprep.subr.bf16.mxu0 0
        %1308 = vmatpush1.bf16.msra.mxu0 0
        %1309 = vmatprep.subr.bf16.mxu0 0
        %1310 = vmatpush1.bf16.msra.mxu0 0
        %1311 = vmatprep.subr.bf16.mxu0 0
        %1312 = vmatpush1.bf16.msra.mxu0 0
        %1313 = vmatprep.subr.bf16.mxu0 0
        %1314 = vmatpush1.bf16.msra.mxu0 0
        %1315 = vmatprep.mubr.bf16.mxu0 0
        %1316 = vmatmul.mubr.bf16.gmra.mrb[0].mxu0 %v1033
        %v1317 = vpop.f32.mrb[0].mxu0
        %v1318 = vadd.f32 %v1269, %v1317
        %v1319 = vpop.f32.mrb[0].mxu0
        %v1320 = vpop.f32.mrb[0].mxu0
        %v1321 = vadd.f32 %v1272, %v1320
        %v1322 = vpop.f32.mrb[0].mxu0
        %1323 = vmatprep.mubr.bf16.mxu0 0
        %1324 = vmatmul.mubr.bf16.gmra.mrb[0].mxu0 %v1036
        %v1325 = vpop.f32.mrb[0].mxu0
        %v1326 = vadd.f32 %v1277, %v1325
        %v1327 = vpop.f32.mrb[0].mxu0
        %v1328 = vpop.f32.mrb[0].mxu0
        %v1329 = vadd.f32 %v1280, %v1328
        %v1330 = vpop.f32.mrb[0].mxu0
        %1331 = vdwg.mxu0
        %vm1332 = vcmp.ge.f32.partialorder %v1318, 0.0
        %vm1333 = vcmp.ge.f32.partialorder %v1321, 0.0
        %vm1334 = vcmp.ge.f32.partialorder %v1326, 0.0
        %vm1335 = vcmp.ge.f32.partialorder %v1329, 0.0
        %v1336 = vmul.f32 %v1318, 0.2
        %v1337 = vmul.f32 %v1321, 0.2
        %v1338 = vmul.f32 %v1326, 0.2
        %v1339 = vmul.f32 %v1329, 0.2
        %v1340 = vsel %vm1332, %v1318, %v1336
        %v1341 = vsel %vm1333, %v1321, %v1337
        %v1342 = vsel %vm1334, %v1326, %v1338
        %v1343 = vsel %vm1335, %v1329, %v1339
        %v1344 = vadd.f32 %v1340, %v1341
        %v1345 = vrot.slane %v1344, 4
        %v1346 = vadd.f32 %v1344, %v1345
        %v1347 = vrot.slane %v1346, 2
        %v1348 = vadd.f32 %v1346, %v1347
        %v1349 = vrot.slane %v1348, 1
        %v1350 = vadd.f32 %v1348, %v1349
        %v1351 = vadd.f32 %v1342, %v1343
        %v1352 = vrot.slane %v1351, 4
        %v1353 = vadd.f32 %v1351, %v1352
        %v1354 = vrot.slane %v1353, 2
        %v1355 = vadd.f32 %v1353, %v1354
        %v1356 = vrot.slane %v1355, 1
        %v1357 = vadd.f32 %v1355, %v1356
        %vm1360 = vcmask 1041409
        %v1361 = vsel %vm1360, %v1357, %v1350
        %1363 = vmatprep.subr.mxu0 0.0
        %1364 = vmatpush1.msra.mxu0 %v224
        %1365 = vmatprep.subr.mxu0 0.0
        %1366 = vmatpush1.msra.mxu0 %v225
        %1367 = vmatprep.subr.mxu0 0.0
        %1368 = vmatpush1.msra.mxu0 %v226
        %1369 = vmatprep.subr.mxu0 0.0
        %1370 = vmatpush1.msra.mxu0 %v227
        %1371 = vmatprep.subr.mxu0 0.0
        %1372 = vmatpush1.msra.mxu0 %v228
        %1373 = vmatprep.subr.mxu0 0.0
        %1374 = vmatpush1.msra.mxu0 %v229
        %1375 = vmatprep.subr.mxu0 0.0
        %1376 = vmatpush1.msra.mxu0 %v230
        %1377 = vmatprep.subr.mxu0 0.0
        %1378 = vmatpush1.msra.mxu0 %v231
        %1379 = vmatprep.subr.mxu0 0.0
        %1380 = vmatpush1.msra.mxu0 %v232
        %1381 = vmatprep.subr.mxu0 0.0
        %1382 = vmatpush1.msra.mxu0 %v233
        %1383 = vmatprep.subr.mxu0 0.0
        %1384 = vmatpush1.msra.mxu0 %v234
        %1385 = vmatprep.subr.mxu0 0.0
        %1386 = vmatpush1.msra.mxu0 %v235
        %1387 = vmatprep.subr.mxu0 0.0
        %1388 = vmatpush1.msra.mxu0 %v236
        %1389 = vmatprep.subr.mxu0 0.0
        %1390 = vmatpush1.msra.mxu0 %v237
        %1391 = vmatprep.subr.mxu0 0.0
        %1392 = vmatpush1.msra.mxu0 %v238
        %1393 = vmatprep.subr.mxu0 0.0
        %1394 = vmatpush1.msra.mxu0 %v239
        %1395 = vmatprep.subr.mxu0 0.0
        %1396 = vmatpush1.msra.mxu0 0.0
        %1397 = vmatprep.subr.mxu0 0.0
        %1398 = vmatpush1.msra.mxu0 0.0
        %1399 = vmatprep.subr.mxu0 0.0
        %1400 = vmatpush1.msra.mxu0 0.0
        %1401 = vmatprep.subr.mxu0 0.0
        %1402 = vmatpush1.msra.mxu0 0.0
        %1403 = vmatprep.subr.mxu0 0.0
        %1404 = vmatpush1.msra.mxu0 0.0
        %1405 = vmatprep.subr.mxu0 0.0
        %1406 = vmatpush1.msra.mxu0 0.0
        %1407 = vmatprep.subr.mxu0 0.0
        %1408 = vmatpush1.msra.mxu0 0.0
        %1409 = vmatprep.subr.mxu0 0.0
        %1410 = vmatpush1.msra.mxu0 0.0
        %1411 = vmatprep.subr.mxu0 0.0
        %1412 = vmatpush1.msra.mxu0 0.0
        %1413 = vmatprep.subr.mxu0 0.0
        %1414 = vmatpush1.msra.mxu0 0.0
        %1415 = vmatprep.subr.mxu0 0.0
        %1416 = vmatpush1.msra.mxu0 0.0
        %1417 = vmatprep.subr.mxu0 0.0
        %1418 = vmatpush1.msra.mxu0 0.0
        %1419 = vmatprep.subr.mxu0 0.0
        %1420 = vmatpush1.msra.mxu0 0.0
        %1421 = vmatprep.subr.mxu0 0.0
        %1422 = vmatpush1.msra.mxu0 0.0
        %1423 = vmatprep.subr.mxu0 0.0
        %1424 = vmatpush1.msra.mxu0 0.0
        %1425 = vmatprep.subr.mxu0 0.0
        %1426 = vmatpush1.msra.mxu0 0.0
        %1427 = vmatprep.mubr.f32.mxu0 0.0
        %1428 = vmatmul.mubr.f32.gmra.mrb[0].mxu0 %v1361
        %v1429 = vpop.f32.mrb[0].mxu0
        %v1430 = vadd.f32 0.0, %v1429
        %v1431 = vpop.f32.mrb[0].mxu0
        %1432 = vdwg.mxu0
        %vm1433 = vcmask 64512
        %v1435 = vsel %vm1433, %v1430, 0
        %1437 = vmatprep.subr.mxu0 0.0
        %1438 = vmatpush1.msra.mxu0 %v240
        %1439 = vmatprep.subr.mxu0 0.0
        %1440 = vmatpush1.msra.mxu0 0.0
        %1441 = vmatprep.subr.mxu0 0.0
        %1442 = vmatpush1.msra.mxu0 0.0
        %1443 = vmatprep.subr.mxu0 0.0
        %1444 = vmatpush1.msra.mxu0 0.0
        %1445 = vmatprep.subr.mxu0 0.0
        %1446 = vmatpush1.msra.mxu0 0.0
        %1447 = vmatprep.subr.mxu0 0.0
        %1448 = vmatpush1.msra.mxu0 0.0
        %1449 = vmatprep.subr.mxu0 0.0
        %1450 = vmatpush1.msra.mxu0 0.0
        %1451 = vmatprep.subr.mxu0 0.0
        %1452 = vmatpush1.msra.mxu0 0.0
        %1453 = vmatprep.subr.mxu0 0.0
        %1454 = vmatpush1.msra.mxu0 0.0
        %1455 = vmatprep.subr.mxu0 0.0
        %1456 = vmatpush1.msra.mxu0 0.0
        %1457 = vmatprep.subr.mxu0 0.0
        %1458 = vmatpush1.msra.mxu0 0.0
        %1459 = vmatprep.subr.mxu0 0.0
        %1460 = vmatpush1.msra.mxu0 0.0
        %1461 = vmatprep.subr.mxu0 0.0
        %1462 = vmatpush1.msra.mxu0 0.0
        %1463 = vmatprep.subr.mxu0 0.0
        %1464 = vmatpush1.msra.mxu0 0.0
        %1465 = vmatprep.subr.mxu0 0.0
        %1466 = vmatpush1.msra.mxu0 0.0
        %1467 = vmatprep.subr.mxu0 0.0
        %1468 = vmatpush1.msra.mxu0 0.0
        %1469 = vmatprep.subr.mxu0 0.0
        %1470 = vmatpush1.msra.mxu0 0.0
        %1471 = vmatprep.subr.mxu0 0.0
        %1472 = vmatpush1.msra.mxu0 0.0
        %1473 = vmatprep.subr.mxu0 0.0
        %1474 = vmatpush1.msra.mxu0 0.0
        %1475 = vmatprep.subr.mxu0 0.0
        %1476 = vmatpush1.msra.mxu0 0.0
        %1477 = vmatprep.subr.mxu0 0.0
        %1478 = vmatpush1.msra.mxu0 0.0
        %1479 = vmatprep.subr.mxu0 0.0
        %1480 = vmatpush1.msra.mxu0 0.0
        %1481 = vmatprep.subr.mxu0 0.0
        %1482 = vmatpush1.msra.mxu0 0.0
        %1483 = vmatprep.subr.mxu0 0.0
        %1484 = vmatpush1.msra.mxu0 0.0
        %1485 = vmatprep.subr.mxu0 0.0
        %1486 = vmatpush1.msra.mxu0 0.0
        %1487 = vmatprep.subr.mxu0 0.0
        %1488 = vmatpush1.msra.mxu0 0.0
        %1489 = vmatprep.subr.mxu0 0.0
        %1490 = vmatpush1.msra.mxu0 0.0
        %1491 = vmatprep.subr.mxu0 0.0
        %1492 = vmatpush1.msra.mxu0 0.0
        %1493 = vmatprep.subr.mxu0 0.0
        %1494 = vmatpush1.msra.mxu0 0.0
        %1495 = vmatprep.subr.mxu0 0.0
        %1496 = vmatpush1.msra.mxu0 0.0
        %1497 = vmatprep.subr.mxu0 0.0
        %1498 = vmatpush1.msra.mxu0 0.0
        %1499 = vmatprep.subr.mxu0 0.0
        %1500 = vmatpush1.msra.mxu0 0.0
        %1501 = vmatprep.mubr.f32.mxu0 0.0
        %1502 = vmatmul.mubr.f32.gmra.mrb[0].mxu0 %v1435
        %v1503 = vpop.f32.mrb[0].mxu0
        %v1504 = vadd.f32 0.0, %v1503
        %v1505 = vpop.f32.mrb[0].mxu0
        %1506 = vdwg.mxu0
        %v1507 = vlaneseq
        %v1508 = vshrl.u32 %v1507, 7
        %v1509 = vsub.s32 0, %v1508
        %v1510 = vrot.slane %v242, %v1509
        %1511 = vmatprep.subr.mxu0 0.0
        %1512 = vmatpush1.msra.mxu0 %v241
        %1513 = vmatprep.subr.mxu0 0.0
        %1514 = vmatpush1.msra.mxu0 0.0
        %1515 = vmatprep.subr.mxu0 0.0
        %1516 = vmatpush1.msra.mxu0 0.0
        %1517 = vmatprep.subr.mxu0 0.0
        %1518 = vmatpush1.msra.mxu0 0.0
        %1519 = vmatprep.subr.mxu0 0.0
        %1520 = vmatpush1.msra.mxu0 0.0
        %1521 = vmatprep.subr.mxu0 0.0
        %1522 = vmatpush1.msra.mxu0 0.0
        %1523 = vmatprep.subr.mxu0 0.0
        %1524 = vmatpush1.msra.mxu0 0.0
        %1525 = vmatprep.subr.mxu0 0.0
        %1526 = vmatpush1.msra.mxu0 0.0
        %1527 = vmatprep.subr.mxu0 0.0
        %1528 = vmatpush1.msra.mxu0 0.0
        %1529 = vmatprep.subr.mxu0 0.0
        %1530 = vmatpush1.msra.mxu0 0.0
        %1531 = vmatprep.subr.mxu0 0.0
        %1532 = vmatpush1.msra.mxu0 0.0
        %1533 = vmatprep.subr.mxu0 0.0
        %1534 = vmatpush1.msra.mxu0 0.0
        %1535 = vmatprep.subr.mxu0 0.0
        %1536 = vmatpush1.msra.mxu0 0.0
        %1537 = vmatprep.subr.mxu0 0.0
        %1538 = vmatpush1.msra.mxu0 0.0
        %1539 = vmatprep.subr.mxu0 0.0
        %1540 = vmatpush1.msra.mxu0 0.0
        %1541 = vmatprep.subr.mxu0 0.0
        %1542 = vmatpush1.msra.mxu0 0.0
        %1543 = vmatprep.subr.mxu0 0.0
        %1544 = vmatpush1.msra.mxu0 0.0
        %1545 = vmatprep.subr.mxu0 0.0
        %1546 = vmatpush1.msra.mxu0 0.0
        %1547 = vmatprep.subr.mxu0 0.0
        %1548 = vmatpush1.msra.mxu0 0.0
        %1549 = vmatprep.subr.mxu0 0.0
        %1550 = vmatpush1.msra.mxu0 0.0
        %1551 = vmatprep.subr.mxu0 0.0
        %1552 = vmatpush1.msra.mxu0 0.0
        %1553 = vmatprep.subr.mxu0 0.0
        %1554 = vmatpush1.msra.mxu0 0.0
        %1555 = vmatprep.subr.mxu0 0.0
        %1556 = vmatpush1.msra.mxu0 0.0
        %1557 = vmatprep.subr.mxu0 0.0
        %1558 = vmatpush1.msra.mxu0 0.0
        %1559 = vmatprep.subr.mxu0 0.0
        %1560 = vmatpush1.msra.mxu0 0.0
        %1561 = vmatprep.subr.mxu0 0.0
        %1562 = vmatpush1.msra.mxu0 0.0
        %1563 = vmatprep.subr.mxu0 0.0
        %1564 = vmatpush1.msra.mxu0 0.0
        %1565 = vmatprep.subr.mxu0 0.0
        %1566 = vmatpush1.msra.mxu0 0.0
        %1567 = vmatprep.subr.mxu0 0.0
        %1568 = vmatpush1.msra.mxu0 0.0
        %1569 = vmatprep.subr.mxu0 0.0
        %1570 = vmatpush1.msra.mxu0 0.0
        %1571 = vmatprep.subr.mxu0 0.0
        %1572 = vmatpush1.msra.mxu0 0.0
        %1573 = vmatprep.subr.mxu0 0.0
        %1574 = vmatpush1.msra.mxu0 0.0
        %1575 = vmatprep.mubr.f32.mxu0 0.0
        %1576 = vmatmul.mubr.f32.gmra.mrb[0].mxu0 %v1435
        %v1577 = vpop.f32.mrb[0].mxu0
        %v1578 = vadd.f32 %v1510, %v1577
        %v1579 = vpop.f32.mrb[0].mxu0
        %1580 = vdwg.mxu0
        %vm1581 = vcmask 58368
        %v1582 = vsel %vm1581, %v1504, 0.0
        %1583 = vadd.xlane.f32.xlu0 %v1582
        %v1584 = vpop.xlane.xlu0 %1583
        %v1585 = vsel %vm1581, %v1578, 0.0
        %1586 = vadd.xlane.f32.xlu0 %v1585
        %v1587 = vpop.xlane.xlu0 %1586
        %v1588 = vmul.f32 %v1584, %v1578
        %v1589 = vxor.u32 %v1588, 2147483648
        %v1590 = vmul.f32 %v1589, 1.442695
        %v1591 = vpow.pop %v1590
        %v1592 = vadd.f32 %v1591, 1.0
        %v1593 = vrcp.pop %v1592
        %v1594 = vmul.f32 1.0, %v1593
        %v1595 = vmul.f32 %v1587, %v1504
        %v1596 = vxor.u32 %v1595, 2147483648
        %v1597 = vmul.f32 %v1596, 1.442695
        %v1598 = vpow.pop %v1597
        %v1599 = vadd.f32 %v1598, 1.0
        %v1600 = vrcp.pop %v1599
        %v1601 = vmul.f32 1.0, %v1600
        %v1603 = vrot.slane %v242, 1
        %s1604 = vtos %v1603
        %v1605 = vstv %s1604
        %v1607 = vmul.f32 %v1594, %v1605
        %v1608 = vsub.f32 1.0, %v242
        %v1610 = vrot.slane %v1608, 1
        %s1611 = vtos %v1610
        %v1612 = vstv %s1611
        %v1614 = vmul.f32 %v1601, %v1612
        %v1615 = vadd.f32 %v1607, %v1614
        %v1617 = vsel %vm1433, %v1615, 0
        %1619 = vmatprep.subr.mxu0 0.0
        %1620 = vmatpush1.msra.mxu0 %v240
        %1621 = vmatprep.subr.mxu0 0.0
        %1622 = vmatpush1.msra.mxu0 0.0
        %1623 = vmatprep.subr.mxu0 0.0
        %1624 = vmatpush1.msra.mxu0 0.0
        %1625 = vmatprep.subr.mxu0 0.0
        %1626 = vmatpush1.msra.mxu0 0.0
        %1627 = vmatprep.subr.mxu0 0.0
        %1628 = vmatpush1.msra.mxu0 0.0
        %1629 = vmatprep.subr.mxu0 0.0
        %1630 = vmatpush1.msra.mxu0 0.0
        %1631 = vmatprep.subr.mxu0 0.0
        %1632 = vmatpush1.msra.mxu0 0.0
        %1633 = vmatprep.subr.mxu0 0.0
        %1634 = vmatpush1.msra.mxu0 0.0
        %1635 = vmatprep.subr.mxu0 0.0
        %1636 = vmatpush1.msra.mxu0 0.0
        %1637 = vmatprep.subr.mxu0 0.0
        %1638 = vmatpush1.msra.mxu0 0.0
        %1639 = vmatprep.subr.mxu0 0.0
        %1640 = vmatpush1.msra.mxu0 0.0
        %1641 = vmatprep.subr.mxu0 0.0
        %1642 = vmatpush1.msra.mxu0 0.0
        %1643 = vmatprep.subr.mxu0 0.0
        %1644 = vmatpush1.msra.mxu0 0.0
        %1645 = vmatprep.subr.mxu0 0.0
        %1646 = vmatpush1.msra.mxu0 0.0
        %1647 = vmatprep.subr.mxu0 0.0
        %1648 = vmatpush1.msra.mxu0 0.0
        %1649 = vmatprep.subr.mxu0 0.0
        %1650 = vmatpush1.msra.mxu0 0.0
        %1651 = vmatprep.subr.mxu0 0.0
        %1652 = vmatpush1.msra.mxu0 0.0
        %1653 = vmatprep.subr.mxu0 0.0
        %1654 = vmatpush1.msra.mxu0 0.0
        %1655 = vmatprep.subr.mxu0 0.0
        %1656 = vmatpush1.msra.mxu0 0.0
        %1657 = vmatprep.subr.mxu0 0.0
        %1658 = vmatpush1.msra.mxu0 0.0
        %1659 = vmatprep.subr.mxu0 0.0
        %1660 = vmatpush1.msra.mxu0 0.0
        %1661 = vmatprep.subr.mxu0 0.0
        %1662 = vmatpush1.msra.mxu0 0.0
        %1663 = vmatprep.subr.mxu0 0.0
        %1664 = vmatpush1.msra.mxu0 0.0
        %1665 = vmatprep.subr.mxu0 0.0
        %1666 = vmatpush1.msra.mxu0 0.0
        %1667 = vmatprep.subr.mxu0 0.0
        %1668 = vmatpush1.msra.mxu0 0.0
        %1669 = vmatprep.subr.mxu0 0.0
        %1670 = vmatpush1.msra.mxu0 0.0
        %1671 = vmatprep.subr.mxu0 0.0
        %1672 = vmatpush1.msra.mxu0 0.0
        %1673 = vmatprep.subr.mxu0 0.0
        %1674 = vmatpush1.msra.mxu0 0.0
        %1675 = vmatprep.subr.mxu0 0.0
        %1676 = vmatpush1.msra.mxu0 0.0
        %1677 = vmatprep.subr.mxu0 0.0
        %1678 = vmatpush1.msra.mxu0 0.0
        %1679 = vmatprep.subr.mxu0 0.0
        %1680 = vmatpush1.msra.mxu0 0.0
        %1681 = vmatprep.subr.mxu0 0.0
        %1682 = vmatpush1.msra.mxu0 0.0
        %1683 = vmatprep.mubr.f32.mxu0 0.0
        %1684 = vmatmul.mubr.f32.gmra.mrb[0].mxu0 %v1617
        %v1685 = vpop.f32.mrb[0].mxu0
        %v1686 = vadd.f32 0.0, %v1685
        %v1687 = vpop.f32.mrb[0].mxu0
        %1688 = vdwg.mxu0
        %v1689 = vxor.u32 %v1686, 2147483648
        %v1690 = vmul.f32 %v1689, 1.442695
        %v1691 = vpow.pop %v1690
        %v1692 = vadd.f32 %v1691, 1.0
        %v1693 = vrcp.pop %v1692
        %v1694 = vmul.f32 1.0, %v1693
        %v1696 = vsel %vm1433, %v1694, 0
        %1698 = vmatprep.subr.mxu0 0.0
        %1699 = vmatpush1.msra.mxu0 %v222
        %1700 = vmatprep.subr.mxu0 0.0
        %1701 = vmatpush1.msra.mxu0 0.0
        %1702 = vmatprep.subr.mxu0 0.0
        %1703 = vmatpush1.msra.mxu0 0.0
        %1704 = vmatprep.subr.mxu0 0.0
        %1705 = vmatpush1.msra.mxu0 0.0
        %1706 = vmatprep.subr.mxu0 0.0
        %1707 = vmatpush1.msra.mxu0 0.0
        %1708 = vmatprep.subr.mxu0 0.0
        %1709 = vmatpush1.msra.mxu0 0.0
        %1710 = vmatprep.subr.mxu0 0.0
        %1711 = vmatpush1.msra.mxu0 0.0
        %1712 = vmatprep.subr.mxu0 0.0
        %1713 = vmatpush1.msra.mxu0 0.0
        %1714 = vmatprep.subr.mxu0 0.0
        %1715 = vmatpush1.msra.mxu0 0.0
        %1716 = vmatprep.subr.mxu0 0.0
        %1717 = vmatpush1.msra.mxu0 0.0
        %1718 = vmatprep.subr.mxu0 0.0
        %1719 = vmatpush1.msra.mxu0 0.0
        %1720 = vmatprep.subr.mxu0 0.0
        %1721 = vmatpush1.msra.mxu0 0.0
        %1722 = vmatprep.subr.mxu0 0.0
        %1723 = vmatpush1.msra.mxu0 0.0
        %1724 = vmatprep.subr.mxu0 0.0
        %1725 = vmatpush1.msra.mxu0 0.0
        %1726 = vmatprep.subr.mxu0 0.0
        %1727 = vmatpush1.msra.mxu0 0.0
        %1728 = vmatprep.subr.mxu0 0.0
        %1729 = vmatpush1.msra.mxu0 0.0
        %1730 = vmatprep.subr.mxu0 0.0
        %1731 = vmatpush1.msra.mxu0 0.0
        %1732 = vmatprep.subr.mxu0 0.0
        %1733 = vmatpush1.msra.mxu0 0.0
        %1734 = vmatprep.subr.mxu0 0.0
        %1735 = vmatpush1.msra.mxu0 0.0
        %1736 = vmatprep.subr.mxu0 0.0
        %1737 = vmatpush1.msra.mxu0 0.0
        %1738 = vmatprep.subr.mxu0 0.0
        %1739 = vmatpush1.msra.mxu0 0.0
        %1740 = vmatprep.subr.mxu0 0.0
        %1741 = vmatpush1.msra.mxu0 0.0
        %1742 = vmatprep.subr.mxu0 0.0
        %1743 = vmatpush1.msra.mxu0 0.0
        %1744 = vmatprep.subr.mxu0 0.0
        %1745 = vmatpush1.msra.mxu0 0.0
        %1746 = vmatprep.subr.mxu0 0.0
        %1747 = vmatpush1.msra.mxu0 0.0
        %1748 = vmatprep.subr.mxu0 0.0
        %1749 = vmatpush1.msra.mxu0 0.0
        %1750 = vmatprep.subr.mxu0 0.0
        %1751 = vmatpush1.msra.mxu0 0.0
        %1752 = vmatprep.subr.mxu0 0.0
        %1753 = vmatpush1.msra.mxu0 0.0
        %1754 = vmatprep.subr.mxu0 0.0
        %1755 = vmatpush1.msra.mxu0 0.0
        %1756 = vmatprep.subr.mxu0 0.0
        %1757 = vmatpush1.msra.mxu0 0.0
        %1758 = vmatprep.subr.mxu0 0.0
        %1759 = vmatpush1.msra.mxu0 0.0
        %1760 = vmatprep.subr.mxu0 0.0
        %1761 = vmatpush1.msra.mxu0 0.0
        %1762 = vmatprep.mubr.f32.mxu0 0.0
        %1763 = vmatmul.mubr.f32.gmra.mrb[0].mxu0 %v1696
        %v1764 = vpop.f32.mrb[0].mxu0
        %v1765 = vadd.f32 0.0, %v1764
        %v1766 = vpop.f32.mrb[0].mxu0
        %1767 = vdwg.mxu0
        %v1770 = vunpack.c.l.s4 1966171168
        %v1771 = vunpack.c.0.s8 %v1770
        %v1772 = vlaneseq
        %v1773 = vshrl.u32 %v1772, 7
        %v1774 = vsub.s32 %v1771, %v1773
        %v1775 = vrot.slane %v1765, %v1774
        %v1776 = vcombine.high %v1775, %v1775
        %v1778 = vunpack.c.l.s4 1966171168
        %v1779 = vunpack.c.0.s8 %v1778
        %v1780 = vlaneseq
        %v1781 = vshrl.u32 %v1780, 7
        %v1782 = vsub.s32 %v1779, %v1781
        %v1783 = vrot.slane %v1775, %v1782
        %v1785 = vunpack.c.l.s4 1966171168
        %v1786 = vunpack.c.0.s8 %v1785
        %v1787 = vlaneseq
        %v1788 = vshrl.u32 %v1787, 7
        %v1789 = vsub.s32 %v1786, %v1788
        %v1790 = vrot.slane %v1776, %v1789
        %v1791 = vlaneseq
        %v1792 = vshrl.u32 %v1791, 7
        %v1793 = vsub.s32 0, %v1792
        %v1794 = vrot.slane %v1783, %v1793
        %v1795 = vlaneseq
        %v1796 = vshrl.u32 %v1795, 7
        %v1797 = vsub.s32 0, %v1796
        %v1798 = vrot.slane %v1790, %v1797
        %v1801 = vmul.f32 %v1340, %v1794
        %v1802 = vmul.f32 %v1341, %v1794
        %v1803 = vmul.f32 %v1342, %v1798
        %v1804 = vmul.f32 %v1343, %v1798
        %v1809 = vrot.slane %v1801, 7
        %v1810 = vrot.slane %v1802, 7
        %v1811 = vsel %vm308, %v1809, %v1810
        %v1812 = vrot.slane %v1803, 7
        %v1813 = vsel %vm308, %v1810, %v1812
        %v1814 = vrot.slane %v1804, 7
        %v1815 = vsel %vm308, %v1812, %v1814
        %v1820 = vsel %vm308, %v1801, %v1809
        %v1821 = vrot.slane %v1801, 1
        %v1822 = vrot.slane %v1802, 1
        %v1823 = vsel %vm321, %v1821, %v1822
        %v1824 = vrot.slane %v1803, 1
        %v1825 = vsel %vm321, %v1822, %v1824
        %v1826 = vrot.slane %v1804, 1
        %v1827 = vsel %vm321, %v1824, %v1826
        %v1832 = vsel %vm321, %v1826, %v1804
        %v1833 = vsel %vm296, %v1823, %v1820
        %v1834 = vsel %vm297, %v1825, %v1811
        %v1835 = vsel %vm298, %v1827, %v1813
        %v1836 = vsel %vm299, %v1832, %v1815
        %v1837 = vsel %vm300, %v1820, %v1823
        %v1838 = vsel %vm301, %v1811, %v1825
        %v1839 = vsel %vm302, %v1813, %v1827
        %v1840 = vsel %vm303, %v1815, %v1832
        %v1841 = vpack.c.bf16 %v1834, %v1833
        %v1842 = vpack.c.bf16 %v1802, %v1801
        %v1843 = vpack.c.bf16 %v1838, %v1837
        %v1844 = vpack.c.bf16 %v1836, %v1835
        %v1845 = vpack.c.bf16 %v1804, %v1803
        %v1846 = vpack.c.bf16 %v1840, %v1839
        %1847 = vmatprep.subr.bf16.mxu0 0
        %1848 = vmatpush1.bf16.msra.mxu0 %v1186
        %1849 = vmatprep.subr.bf16.mxu0 0
        %1850 = vmatpush1.bf16.msra.mxu0 %v1187
        %1851 = vmatprep.subr.bf16.mxu0 0
        %1852 = vmatpush1.bf16.msra.mxu0 %v1188
        %1853 = vmatprep.subr.bf16.mxu0 0
        %1854 = vmatpush1.bf16.msra.mxu0 %v1189
        %1855 = vmatprep.subr.bf16.mxu0 0
        %1856 = vmatpush1.bf16.msra.mxu0 %v1190
        %1857 = vmatprep.subr.bf16.mxu0 0
        %1858 = vmatpush1.bf16.msra.mxu0 %v1191
        %1859 = vmatprep.subr.bf16.mxu0 0
        %1860 = vmatpush1.bf16.msra.mxu0 %v1192
        %1861 = vmatprep.subr.bf16.mxu0 0
        %1862 = vmatpush1.bf16.msra.mxu0 %v1193
        %1863 = vmatprep.subr.bf16.mxu0 0
        %1864 = vmatpush1.bf16.msra.mxu0 %v1194
        %1865 = vmatprep.subr.bf16.mxu0 0
        %1866 = vmatpush1.bf16.msra.mxu0 %v1195
        %1867 = vmatprep.subr.bf16.mxu0 0
        %1868 = vmatpush1.bf16.msra.mxu0 %v1196
        %1869 = vmatprep.subr.bf16.mxu0 0
        %1870 = vmatpush1.bf16.msra.mxu0 %v1197
        %1871 = vmatprep.subr.bf16.mxu0 0
        %1872 = vmatpush1.bf16.msra.mxu0 %v1198
        %1873 = vmatprep.subr.bf16.mxu0 0
        %1874 = vmatpush1.bf16.msra.mxu0 %v1199
        %1875 = vmatprep.subr.bf16.mxu0 0
        %1876 = vmatpush1.bf16.msra.mxu0 %v1200
        %1877 = vmatprep.subr.bf16.mxu0 0
        %1878 = vmatpush1.bf16.msra.mxu0 %v1201
        %1879 = vmatprep.mubr.bf16.mxu0 %v1842
        %1880 = vmatmul.mubr.bf16.gmra.mrb[0].mxu0 %v1841
        %v1881 = vpop.f32.mrb[0].mxu0
        %v1882 = vadd.f32 %v1089, %v1881
        %v1883 = vpop.f32.mrb[0].mxu0
        %v1884 = vpop.f32.mrb[0].mxu0
        %v1885 = vadd.f32 %v1089, %v1884
        %v1886 = vpop.f32.mrb[0].mxu0
        %1887 = vmatprep.mubr.bf16.mxu0 %v1845
        %1888 = vmatmul.mubr.bf16.gmra.mrb[0].mxu0 %v1844
        %v1889 = vpop.f32.mrb[0].mxu0
        %v1890 = vadd.f32 %v1089, %v1889
        %v1891 = vpop.f32.mrb[0].mxu0
        %v1892 = vpop.f32.mrb[0].mxu0
        %v1893 = vadd.f32 %v1089, %v1892
        %v1894 = vpop.f32.mrb[0].mxu0
        %1895 = vdwg.mxu0
        %1896 = vmatprep.subr.bf16.mxu0 0
        %1897 = vmatpush1.bf16.msra.mxu0 %v1202
        %1898 = vmatprep.subr.bf16.mxu0 0
        %1899 = vmatpush1.bf16.msra.mxu0 %v1203
        %1900 = vmatprep.subr.bf16.mxu0 0
        %1901 = vmatpush1.bf16.msra.mxu0 %v1204
        %1902 = vmatprep.subr.bf16.mxu0 0
        %1903 = vmatpush1.bf16.msra.mxu0 %v1205
        %1904 = vmatprep.subr.bf16.mxu0 0
        %1905 = vmatpush1.bf16.msra.mxu0 %v1206
        %1906 = vmatprep.subr.bf16.mxu0 0
        %1907 = vmatpush1.bf16.msra.mxu0 %v1207
        %1908 = vmatprep.subr.bf16.mxu0 0
        %1909 = vmatpush1.bf16.msra.mxu0 %v1208
        %1910 = vmatprep.subr.bf16.mxu0 0
        %1911 = vmatpush1.bf16.msra.mxu0 %v1209
        %1912 = vmatprep.subr.bf16.mxu0 0
        %1913 = vmatpush1.bf16.msra.mxu0 0
        %1914 = vmatprep.subr.bf16.mxu0 0
        %1915 = vmatpush1.bf16.msra.mxu0 0
        %1916 = vmatprep.subr.bf16.mxu0 0
        %1917 = vmatpush1.bf16.msra.mxu0 0
        %1918 = vmatprep.subr.bf16.mxu0 0
        %1919 = vmatpush1.bf16.msra.mxu0 0
        %1920 = vmatprep.subr.bf16.mxu0 0
        %1921 = vmatpush1.bf16.msra.mxu0 0
        %1922 = vmatprep.subr.bf16.mxu0 0
        %1923 = vmatpush1.bf16.msra.mxu0 0
        %1924 = vmatprep.subr.bf16.mxu0 0
        %1925 = vmatpush1.bf16.msra.mxu0 0
        %1926 = vmatprep.subr.bf16.mxu0 0
        %1927 = vmatpush1.bf16.msra.mxu0 0
        %1928 = vmatprep.mubr.bf16.mxu0 0
        %1929 = vmatmul.mubr.bf16.gmra.mrb[0].mxu0 %v1843
        %v1930 = vpop.f32.mrb[0].mxu0
        %v1931 = vadd.f32 %v1882, %v1930
        %v1932 = vpop.f32.mrb[0].mxu0
        %v1933 = vpop.f32.mrb[0].mxu0
        %v1934 = vadd.f32 %v1885, %v1933
        %v1935 = vpop.f32.mrb[0].mxu0
        %1936 = vmatprep.mubr.bf16.mxu0 0
        %1937 = vmatmul.mubr.bf16.gmra.mrb[0].mxu0 %v1846
        %v1938 = vpop.f32.mrb[0].mxu0
        %v1939 = vadd.f32 %v1890, %v1938
        %v1940 = vpop.f32.mrb[0].mxu0
        %v1941 = vpop.f32.mrb[0].mxu0
        %v1942 = vadd.f32 %v1893, %v1941
        %v1943 = vpop.f32.mrb[0].mxu0
        %1944 = vdwg.mxu0
        %v1945 = vadd.f32 %v1931, %v991
        %v1946 = vadd.f32 %v1934, %v992
        %v1947 = vadd.f32 %v1939, %v993
        %v1948 = vadd.f32 %v1942, %v994
        %1949 = vst [vmem:[%s208] sm:$0xff] %v1945
        %1950 = vst [vmem:[%s208 + $0x8] sm:$0xff] %v1946
        %1951 = vst [vmem:[%s208 + $0x10] sm:$0xff] %v1947
        %1952 = vst [vmem:[%s208 + $0x18] sm:$0xff] %v1948
        %s1953 = sand.u32 %s116, 1
        %s1954 = scalar_lea.sflag [#allocation4], %s1953
        %s1955 = sand.u32 %s116, 1
        %s1956 = smul.addr %s1955, 32
        %s1957 = scalar_lea.vmem [#allocation5], %s1956
        // Predicated region
        $region41: #{tpu_custom_call.1} parent=35 // pred_check
          %p1958 = pneg %p126
        $region42: #{tpu_custom_call.1} parent=35 // pred_check_branch
          %1960 = sbr.rel (%p1958) target = $region44
        $region43: #{tpu_custom_call.1} parent=35 // pred_region
          %s1961 = smul.u32 2, %s19
          %s1963 = ssub.s32 512, 512
          %1964 = vsyncadd %s1954, %s1963
          %s1965 = smul.addr %s1961, 2
          %s1966 = smul.addr %s1965, 128
          %s1967 = scalar_lea.hbm %s4, %s1966
          %s1968 = sshll.u32 %s1957, 4
          %s1969 = int_to_ptr.vmem [resolvable:$true] %s1968
          %1974 = dma.vmem_to_hbm [thread:$0]  %s1969, 512, %s1967, %s1954, 128, 128, 8
        $region44: #{tpu_custom_call.1} parent=35 // pred_fallthru
          _
      $region36: #{tpu_custom_call.1} parent=5 // pred_fallthru
        _
      %p1975 = scmp.le.s32.totalorder 2, %s14
      // Predicated region
      $region45: #{tpu_custom_call.1} parent=5 // pred_check
        %p1976 = pneg %p1975
      $region46: #{tpu_custom_call.1} parent=5 // pred_check_branch
        %1978 = sbr.rel (%p1976) target = $region48
      $region47: #{tpu_custom_call.1} parent=5 // pred_region
        %s1979 = ssub.s32 %s14, 2
        // Predicated region
        $region49: #{tpu_custom_call.1} parent=47 // pred_check
          %p1980 = pneg %p132
        $region50: #{tpu_custom_call.1} parent=47 // pred_check_branch
          %1982 = sbr.rel (%p1980) target = $region52
        $region51: #{tpu_custom_call.1} parent=47 // pred_region
          %s1983 = sand.u32 %s117, 1
          %s1984 = scalar_lea.sflag [#allocation4], %s1983
          %s1985 = sand.u32 %s117, 1
          %s1986 = smul.addr %s1985, 32
          %s1987 = scalar_lea.vmem [#allocation5], %s1986
          %1988 = dma.done %s1984, 512
        $region52: #{tpu_custom_call.1} parent=47 // pred_fallthru
          _
      $region48: #{tpu_custom_call.1} parent=5 // pred_fallthru
        _
    $region6: #{tpu_custom_call.1} parent=1 // loop_footer
      %s18 = sadd.s32 1, %s14
    $region7: #{tpu_custom_call.1} parent=1 // loop_footer_branch
      %13 = sbr.rel target = $region3
    $region8: #{tpu_custom_call.1} parent=1 // loop_exit
      _
    %1989 = vsyncpa [#allocation3], 1
    %s1990 = scalar_lea.sflag [#allocation3], 1
    %1991 = vsyncpa %s1990, 1
    %1992 = vsyncpa [#allocation4], 1
    %s1993 = scalar_lea.sflag [#allocation4], 1
    %1994 = vsyncpa %s1993, 1

</llo_original>
